<compile_context>
chip_gen: v5e
topology: v5e:2x2
jax: 0.10.0
libtpu: 0.0.40
codegen_flags: <defaults>
</compile_context>

<pallas_src>
import functools

import jax
import jax.numpy as jnp
import numpy as np
from jax import lax
from jax.experimental import pallas as pl
from jax.experimental.pallas import tpu as pltpu


_LANE = 128
_SUBLANE = 8
_BN_EPS = 1e-5
_STRIP_ELEMS = 32 * 1024   # ~32 f32 vregs of depthwise accumulator per row strip


def _pad_for_kernel(kernel_size):
    return {1: 0, 3: 1, 5: 2, 7: 3}[kernel_size]


def _round_up(x, m):
    return ((x + m - 1) // m) * m


# ----------------------------- fused Pallas kernel -----------------------------

def _make_fused_kernel(*, K, stride, pad, H, W, Ho, Wo, Wc, Hp, W0, Wpa,
                       Cin_p, Cblk, Cout_p, n_cb, strip_rows, residual):
    """Fused MBConv body for one (batch, cmid-block) program."""

    def kernel(x_ref, we_ref, s1_ref, b1_ref, wd_ref, s2_ref, b2_ref,
               wp_ref, s3_ref, b3_ref, o_ref, xpad_ref, *scratch):
        scratch = list(scratch)
        acc_ref = scratch.pop(0) if n_cb > 1 else None
        dws_ref = scratch.pop(0) if stride != 1 else None

        c = pl.program_id(1)

        # ---- zero ONLY the halo ring, once per batch (interior is fully
        #      overwritten below every step; scratch persists across steps) ----
        if pad > 0:
            @pl.when(c == 0)
            def _zero_halo():
                z_rows = jnp.zeros((pad, Wpa, Cblk), jnp.float32)
                xpad_ref[0:pad, :, :] = z_rows
                xpad_ref[pad + H:Hp, :, :] = z_rows
                xpad_ref[pad:pad + H, 0:W0, :] = jnp.zeros(
                    (H, W0, Cblk), jnp.float32)
                xpad_ref[pad:pad + H, W0 + W:Wpa, :] = jnp.zeros(
                    (H, pad, Cblk), jnp.float32)

        # ---- 1x1 expand (MXU, bf16 operands / f32 acc) + folded BN + ReLU6 ----
        xm = x_ref[0].reshape(H * W, Cin_p)
        e = jnp.dot(xm.astype(jnp.bfloat16), we_ref[...],
                    preferred_element_type=jnp.float32)
        e = jnp.clip(e * s1_ref[...] + b1_ref[...], 0.0, 6.0)
        # sublane-aligned interior store (left halo padded to 8 columns)
        xpad_ref[pad:pad + H, W0:W0 + W, :] = e.reshape(H, W, Cblk)

        wd = wd_ref[...]                       # (K, K, Cblk), hoisted once
        s2 = s2_ref[...]
        b2 = b2_ref[...]

        # ---- depthwise KxK + BN + ReLU6 + 1x1 projection, per row strip ----
        for r0 in range(0, Ho, strip_rows):
            rows = min(strip_rows, Ho - r0)
            acc = None                         # vreg-resident tap accumulator
            for kh in range(K):
                r_in = r0 * stride + kh
                if stride == 1:
                    rsl = slice(r_in, r_in + rows)
                else:
                    # stride only on the H (major) axis -> no sublane gathers
                    rsl = pl.ds(r_in, rows, stride)
                for kw in range(K):
                    c0 = W0 - pad + kw
                    patch = xpad_ref[rsl, c0:c0 + Wc, :]
                    tap = patch * wd[kh:kh + 1, kw:kw + 1, :]
                    acc = tap if acc is None else acc + tap
            h = jnp.clip(acc * s2 + b2, 0.0, 6.0)        # (rows, Wc, Cblk)

            if stride != 1:
                # single W decimation pass instead of K*K sublane-strided taps
                dws_ref[0:rows, :, :] = h
                h = dws_ref[0:rows, pl.ds(0, Wo, stride), :]

            hb = h.reshape(rows * Wo, Cblk).astype(jnp.bfloat16)
            proj = jnp.dot(hb, wp_ref[...], preferred_element_type=jnp.float32)

            if n_cb == 1:
                # fast path: no middle-channel accumulation needed
                y = proj * s3_ref[...] + b3_ref[...]
                if residual:   # stride != 2 -> Ho==H, Wo==W, Cin_p==Cout_p
                    y = y + x_ref[0, r0:r0 + rows].reshape(rows * Wo, Cin_p)
                o_ref[:, r0:r0 + rows, :, :] = (
                    y.reshape(1, rows, Wo, Cout_p).astype(o_ref.dtype))
            else:
                off = r0 * Wo
                n = rows * Wo

                @pl.when(c == 0)
                def _set():
                    acc_ref[off:off + n, :] = proj        # no zero-fill pass

                @pl.when(c > 0)
                def _add():
                    acc_ref[off:off + n, :] += proj

        if n_cb > 1:
            @pl.when(c == n_cb - 1)
            def _finalize():
                y = acc_ref[...] * s3_ref[...] + b3_ref[...]
                if residual:
                    y = y + x_ref[0].reshape(Ho * Wo, Cin_p)
                o_ref[...] = y.reshape(1, Ho, Wo, Cout_p).astype(o_ref.dtype)

    return kernel


# ------------------------------ host wrappers -------------------------------

def init_mbconv_params(key, kernel_size, cin, cout, expand_ratio=6, ratio=1.0):
    """Random parameters mirroring the PyTorch module (JAX-friendly layouts)."""
    feature_dim = round(cin * expand_ratio)
    cmid = int(feature_dim * ratio)
    if cmid % 2 != 0:
        cmid += 1
    ks = jax.random.split(key, 15)

    def rnd(k, shape, scale=0.1):
        return scale * jax.random.normal(k, shape, jnp.float32)

    params = {
        "w_exp": rnd(ks[0], (cin, cmid)),                       # 1x1 expand
        "bn1_gamma": 1.0 + rnd(ks[1], (cmid,)),
        "bn1_beta": rnd(ks[2], (cmid,)),
        "bn1_mean": rnd(ks[3], (cmid,)),
        "bn1_var": 0.5 + jax.random.uniform(ks[4], (cmid,)),
        "w_dw": rnd(ks[5], (kernel_size, kernel_size, cmid)),   # depthwise
        "bn2_gamma": 1.0 + rnd(ks[6], (cmid,)),
        "bn2_beta": rnd(ks[7], (cmid,)),
        "bn2_mean": rnd(ks[8], (cmid,)),
        "bn2_var": 0.5 + jax.random.uniform(ks[9], (cmid,)),
        "w_pr": rnd(ks[10], (cmid, cout)),                      # 1x1 project
        "bn3_gamma": 1.0 + rnd(ks[11], (cout,)),
        "bn3_beta": rnd(ks[12], (cout,)),
        "bn3_mean": rnd(ks[13], (cout,)),
        "bn3_var": 0.5 + jax.random.uniform(ks[14], (cout,)),
    }
    return params, cmid


def mbconv_prepare_params(params):
    """Fold BN (inference mode) into scale/bias, pad cin/cmid/cout to 128-lane
    multiples (padded channels stay exactly 0 through the whole block) and
    store the MXU weights as bf16."""

    def fold(g, b, m, v):
        s = g / jnp.sqrt(v + _BN_EPS)
        return s, b - m * s

    cin, cmid = params["w_exp"].shape
    cout = params["w_pr"].shape[1]
    cin_p = _round_up(cin, _LANE)
    cmid_p = _round_up(cmid, _LANE)
    cout_p = _round_up(cout, _LANE)
    pi, pm, po = cin_p - cin, cmid_p - cmid, cout_p - cout

    s1, b1 = fold(params["bn1_gamma"], params["bn1_beta"],
                  params["bn1_mean"], params["bn1_var"])
    s2, b2 = fold(params["bn2_gamma"], params["bn2_beta"],
                  params["bn2_mean"], params["bn2_var"])
    s3, b3 = fold(params["bn3_gamma"], params["bn3_beta"],
                  params["bn3_mean"], params["bn3_var"])

    return {
        "w_exp": jnp.pad(params["w_exp"], ((0, pi), (0, pm))).astype(jnp.bfloat16),
        "s1": jnp.pad(s1, (0, pm)).reshape(1, cmid_p),
        "b1": jnp.pad(b1, (0, pm)).reshape(1, cmid_p),
        "w_dw": jnp.pad(params["w_dw"], ((0, 0), (0, 0), (0, pm))),
        "s2": jnp.pad(s2, (0, pm)).reshape(1, cmid_p),
        "b2": jnp.pad(b2, (0, pm)).reshape(1, cmid_p),
        "w_pr": jnp.pad(params["w_pr"], ((0, pm), (0, po))).astype(jnp.bfloat16),
        "s3": jnp.pad(s3, (0, po)).reshape(1, cout_p),
        "b3": jnp.pad(b3, (0, po)).reshape(1, cout_p),
    }


@functools.partial(jax.jit, static_argnums=(2, 3, 4))
def mbconv_forward(x_nchw, prep, kernel_size, stride, out_channels):
    K = kernel_size
    pad = _pad_for_kernel(K)
    B, Cin, H, W = x_nchw.shape
    Cin_p, Cmid_p = prep["w_exp"].shape
    Cout_p = prep["w_pr"].shape[1]
    Cblk = _LANE
    n_cb = Cmid_p // Cblk
    Ho = (H + 2 * pad - K) // stride + 1
    Wo = (W + 2 * pad - K) // stride + 1
    Wc = W + 2 * pad - K + 1               # stride-1 tap width
    Hp = H + 2 * pad
    W0 = _SUBLANE                          # sublane-aligned left halo
    Wpa = W0 + W + pad
    residual = (stride != 2)               # matches the module's forward()
    if residual:
        assert Cin == out_channels and Ho == H and Wo == W, \
            "residual path requires in==out channels and stride 1"

    strip_rows = max(1, min(Ho, _STRIP_ELEMS // (Wc * Cblk)))

    x = jnp.transpose(x_nchw, (0, 2, 3, 1))          # NCHW -> NHWC (C on lanes)
    if Cin_p > Cin:
        x = jnp.pad(x, ((0, 0), (0, 0), (0, 0), (0, Cin_p - Cin)))

    kernel = _make_fused_kernel(
        K=K, stride=stride, pad=pad, H=H, W=W, Ho=Ho, Wo=Wo, Wc=Wc, Hp=Hp,
        W0=W0, Wpa=Wpa, Cin_p=Cin_p, Cblk=Cblk, Cout_p=Cout_p, n_cb=n_cb,
        strip_rows=strip_rows, residual=residual)

    scratch = [pltpu.VMEM((Hp, Wpa, Cblk), jnp.float32)]    # padded expand plane
    if n_cb > 1:
        scratch.append(pltpu.VMEM((Ho * Wo, Cout_p), jnp.float32))   # proj accum
    if stride != 1:
        scratch.append(pltpu.VMEM((strip_rows, Wc, Cblk), jnp.float32))

    def nbytes(shape, dt):
        return int(np.prod(shape)) * jnp.dtype(dt).itemsize

    est = 2 * (nbytes((1, H, W, Cin_p), jnp.float32)
               + nbytes((Cin_p, Cblk), jnp.bfloat16)
               + 4 * nbytes((1, Cblk), jnp.float32)
               + nbytes((K, K, Cblk), jnp.float32)
               + nbytes((Cblk, Cout_p), jnp.bfloat16)
               + 2 * nbytes((1, Cout_p), jnp.float32)
               + nbytes((1, Ho, Wo, Cout_p), jnp.float32))
    est += nbytes((Hp, Wpa, Cblk), jnp.float32)
    if n_cb > 1:
        est += nbytes((Ho * Wo, Cout_p), jnp.float32)
    if stride != 1:
        est += nbytes((strip_rows, Wc, Cblk), jnp.float32)
    vmem_limit = int(min(48 * 1024 * 1024, max(16 * 1024 * 1024, 2 * est)))

    out = pl.pallas_call(
        kernel,
        out_shape=jax.ShapeDtypeStruct((B, Ho, Wo, Cout_p), x.dtype),
        grid=(B, n_cb),
        in_specs=[
            pl.BlockSpec((1, H, W, Cin_p), lambda b, c: (b, 0, 0, 0)),  # x
            pl.BlockSpec((Cin_p, Cblk), lambda b, c: (0, c)),           # w_exp
            pl.BlockSpec((1, Cblk), lambda b, c: (0, c)),               # s1
            pl.BlockSpec((1, Cblk), lambda b, c: (0, c)),               # b1
            pl.BlockSpec((K, K, Cblk), lambda b, c: (0, 0, c)),         # w_dw
            pl.BlockSpec((1, Cblk), lambda b, c: (0, c)),               # s2
            pl.BlockSpec((1, Cblk), lambda b, c: (0, c)),               # b2
            pl.BlockSpec((Cblk, Cout_p), lambda b, c: (c, 0)),          # w_pr
            pl.BlockSpec((1, Cout_p), lambda b, c: (0, 0)),             # s3
            pl.BlockSpec((1, Cout_p), lambda b, c: (0, 0)),             # b3
        ],
        out_specs=pl.BlockSpec((1, Ho, Wo, Cout_p), lambda b, c: (b, 0, 0, 0)),
        scratch_shapes=scratch,
        compiler_params=pltpu.CompilerParams(
            dimension_semantics=("parallel", "arbitrary"),
            vmem_limit_bytes=vmem_limit),
    )(x, prep["w_exp"], prep["s1"], prep["b1"],
      prep["w_dw"], prep["s2"], prep["b2"],
      prep["w_pr"], prep["s3"], prep["b3"])

    out = out[..., :out_channels]                 # drop lane padding
    return jnp.transpose(out, (0, 3, 1, 2))       # NHWC -> NCHW


# -------------------------- pure-JAX reference ------------------------------

def _ref_forward(x_nchw, params, kernel_size, stride):
    pad = _pad_for_kernel(kernel_size)
    cmid = params["w_exp"].shape[1]
    hp = lax.Precision.HIGHEST

    def bn(y, g, b, m, v):
        return ((y - m[None, :, None, None])
                / jnp.sqrt(v + _BN_EPS)[None, :, None, None]
                * g[None, :, None, None] + b[None, :, None, None])

    def conv(y, w_oihw, strides, padding, groups=1):
        return lax.conv_general_dilated(
            y, w_oihw, strides, padding,
            dimension_numbers=("NCHW", "OIHW", "NCHW"),
            feature_group_count=groups, precision=hp)

    w1 = jnp.transpose(params["w_exp"], (1, 0))[:, :, None, None]
    y = conv(x_nchw, w1, (1, 1), [(0, 0)] * 2)
    y = jnp.clip(bn(y, params["bn1_gamma"], params["bn1_beta"],
                    params["bn1_mean"], params["bn1_var"]), 0.0, 6.0)

    wd = jnp.transpose(params["w_dw"], (2, 0, 1))[:, None, :, :]
    y = conv(y, wd, (stride, stride), [(pad, pad)] * 2, groups=cmid)
    y = jnp.clip(bn(y, params["bn2_gamma"], params["bn2_beta"],
                    params["bn2_mean"], params["bn2_var"]), 0.0, 6.0)

    wp = jnp.transpose(params["w_pr"], (1, 0))[:, :, None, None]
    y = conv(y, wp, (1, 1), [(0, 0)] * 2)
    y = bn(y, params["bn3_gamma"], params["bn3_beta"],
           params["bn3_mean"], params["bn3_var"])
    if stride != 2:
        y = x_nchw + y
    return y


if __name__ == "__main__":
    B, H, W = 2, 16, 16
    configs = [
        dict(kernel_size=3, stride=1, cin=4, cout=4, expand_ratio=6),
        dict(kernel_size=5, stride=1, cin=8, cout=8, expand_ratio=4),
        dict(kernel_size=3, stride=2, cin=4, cout=8, expand_ratio=6),   # stride path
        dict(kernel_size=3, stride=1, cin=32, cout=32, expand_ratio=6),  # n_cb = 2
    ]
    key = jax.random.PRNGKey(0)
    for cfg in configs:
        key, kx, kp = jax.random.split(key, 3)
        x = jax.random.normal(kx, (B, cfg["cin"], H, W), jnp.float32)
        params, _ = init_mbconv_params(
            kp, cfg["kernel_size"], cfg["cin"], cfg["cout"], cfg["expand_ratio"])
        prep = mbconv_prepare_params(params)

        out = jax.block_until_ready(
            mbconv_forward(x, prep, cfg["kernel_size"], cfg["stride"], cfg["cout"]))
        ref = jax.block_until_ready(
            _ref_forward(x, params, cfg["kernel_size"], cfg["stride"]))

        pad = _pad_for_kernel(cfg["kernel_size"])
        Ho = (H + 2 * pad - cfg["kernel_size"]) // cfg["stride"] + 1
        assert out.shape == (B, cfg["cout"], Ho, Ho), out.shape
        # bf16 MXU operands (f32 accumulate) -> looser tolerance than pure f32
        np.testing.assert_allclose(np.asarray(out), np.asarray(ref),
                                   rtol=2e-2, atol=2e-2)
    print("KERNEL_OK")
</pallas_src>

<mosaic_0001>
module attributes {stable_mosaic.version = 11 : i64} {
  func.func @kernel(%arg0: i32, %arg1: i32, %arg2: memref<1x16x16x128xf32, #tpu.memory_space<vmem>>, %arg3: memref<128x128xbf16, #tpu.memory_space<vmem>>, %arg4: memref<1x128xf32, #tpu.memory_space<vmem>>, %arg5: memref<1x128xf32, #tpu.memory_space<vmem>>, %arg6: memref<3x3x128xf32, #tpu.memory_space<vmem>>, %arg7: memref<1x128xf32, #tpu.memory_space<vmem>>, %arg8: memref<1x128xf32, #tpu.memory_space<vmem>>, %arg9: memref<128x128xbf16, #tpu.memory_space<vmem>>, %arg10: memref<1x128xf32, #tpu.memory_space<vmem>>, %arg11: memref<1x128xf32, #tpu.memory_space<vmem>>, %arg12: memref<1x16x16x128xf32, #tpu.memory_space<vmem>>, %arg13: memref<18x25x128xf32, #tpu.memory_space<vmem>>) attributes {dimension_semantics = [#tpu.dimension_semantics<parallel>, #tpu.dimension_semantics<arbitrary>], iteration_bounds = array<i64: 2, 1>, scalar_prefetch = 0 : i64, scratch_operands = 1 : i64, tpu.core_type = #tpu.core_type<tc>, window_params = [{transform_indices = @transform_0, window_bounds = array<i64: 1, 16, 16, 128>}, {transform_indices = @transform_1, window_bounds = array<i64: 128, 128>}, {transform_indices = @transform_2, window_bounds = array<i64: 1, 128>}, {transform_indices = @transform_3, window_bounds = array<i64: 1, 128>}, {transform_indices = @transform_4, window_bounds = array<i64: 3, 3, 128>}, {transform_indices = @transform_5, window_bounds = array<i64: 1, 128>}, {transform_indices = @transform_6, window_bounds = array<i64: 1, 128>}, {transform_indices = @transform_7, window_bounds = array<i64: 128, 128>}, {pipeline_mode = #tpu.pipeline_mode<synchronous>, transform_indices = @transform_8, window_bounds = array<i64: 1, 128>}, {pipeline_mode = #tpu.pipeline_mode<synchronous>, transform_indices = @transform_9, window_bounds = array<i64: 1, 128>}, {transform_indices = @transform_10, window_bounds = array<i64: 1, 16, 16, 128>}]} {
    %c0_i32 = arith.constant 0 : i32
    %0 = arith.cmpi eq, %arg1, %c0_i32 : i32
    %1 = arith.extui %0 : i1 to i32
    %c0_i32_0 = arith.constant 0 : i32
    %2 = arith.cmpi ne, %1, %c0_i32_0 : i32
    scf.if %2 {
      %cst_61 = arith.constant 0.000000e+00 : f32
      %94 = vector.broadcast %cst_61 : f32 to vector<1x25x128xf32>
      %c0_62 = arith.constant 0 : index
      %c0_63 = arith.constant 0 : index
      %c0_64 = arith.constant 0 : index
      %95 = vector.load %arg13[%c0_62, %c0_63, %c0_64] : memref<18x25x128xf32, #tpu.memory_space<vmem>>, vector<1x25x128xf32>
      tpu.vector_store %arg13[%c0_62, %c0_63, %c0_64], %94 {strides = array<i32>} : memref<18x25x128xf32, #tpu.memory_space<vmem>>, vector<1x25x128xf32>,
      %c17 = arith.constant 17 : index
      %c0_65 = arith.constant 0 : index
      %c0_66 = arith.constant 0 : index
      %96 = vector.load %arg13[%c17, %c0_65, %c0_66] : memref<18x25x128xf32, #tpu.memory_space<vmem>>, vector<1x25x128xf32>
      tpu.vector_store %arg13[%c17, %c0_65, %c0_66], %94 {strides = array<i32>} : memref<18x25x128xf32, #tpu.memory_space<vmem>>, vector<1x25x128xf32>,
      %cst_67 = arith.constant 0.000000e+00 : f32
      %97 = vector.broadcast %cst_67 : f32 to vector<16x8x128xf32>
      %c1_68 = arith.constant 1 : index
      %c0_69 = arith.constant 0 : index
      %c0_70 = arith.constant 0 : index
      %98 = vector.load %arg13[%c1_68, %c0_69, %c0_70] : memref<18x25x128xf32, #tpu.memory_space<vmem>>, vector<16x8x128xf32>
      tpu.vector_store %arg13[%c1_68, %c0_69, %c0_70], %97 {strides = array<i32>} : memref<18x25x128xf32, #tpu.memory_space<vmem>>, vector<16x8x128xf32>,
      %cst_71 = arith.constant 0.000000e+00 : f32
      %99 = vector.broadcast %cst_71 : f32 to vector<16x1x128xf32>
      %c1_72 = arith.constant 1 : index
      %c24 = arith.constant 24 : index
      %c0_73 = arith.constant 0 : index
      %100 = vector.load %arg13[%c1_72, %c24, %c0_73] : memref<18x25x128xf32, #tpu.memory_space<vmem>>, vector<16x1x128xf32>
      tpu.vector_store %arg13[%c1_72, %c24, %c0_73], %99 {strides = array<i32>} : memref<18x25x128xf32, #tpu.memory_space<vmem>>, vector<16x1x128xf32>,
    } else {
    }
    %c0 = arith.constant 0 : index
    %c0_1 = arith.constant 0 : index
    %c0_2 = arith.constant 0 : index
    %c0_3 = arith.constant 0 : index
    %3 = vector.load %arg2[%c0, %c0_1, %c0_2, %c0_3] : memref<1x16x16x128xf32, #tpu.memory_space<vmem>>, vector<1x16x16x128xf32>
    %4 = vector.shape_cast %3 : vector<1x16x16x128xf32> to vector<16x16x128xf32>
    %5 = vector.shape_cast %4 : vector<16x16x128xf32> to vector<256x128xf32>
    %6 = arith.truncf %5 : vector<256x128xf32> to vector<256x128xbf16>
    %c0_4 = arith.constant 0 : index
    %c0_5 = arith.constant 0 : index
    %7 = vector.load %arg3[%c0_4, %c0_5] : memref<128x128xbf16, #tpu.memory_space<vmem>>, vector<128x128xbf16>
    %cst = arith.constant dense<0.000000e+00> : vector<256x128xf32>
    %8 = tpu.matmul %6, %7, %cst {dimension_numbers = #tpu.dot_dimension_numbers<[1], [0], [0], [1], [0, 0, 1, 1], [], []>} : vector<256x128xbf16>, vector<128x128xbf16>, vector<256x128xf32> -> vector<256x128xf32>
    %c0_6 = arith.constant 0 : index
    %c0_7 = arith.constant 0 : index
    %9 = vector.load %arg4[%c0_6, %c0_7] : memref<1x128xf32, #tpu.memory_space<vmem>>, vector<1x128xf32>
    %10 = vector.broadcast %9 : vector<1x128xf32> to vector<256x128xf32>
    %11 = arith.mulf %8, %10 : vector<256x128xf32>
    %c0_8 = arith.constant 0 : index
    %c0_9 = arith.constant 0 : index
    %12 = vector.load %arg5[%c0_8, %c0_9] : memref<1x128xf32, #tpu.memory_space<vmem>>, vector<1x128xf32>
    %13 = vector.broadcast %12 : vector<1x128xf32> to vector<256x128xf32>
    %14 = arith.addf %11, %13 : vector<256x128xf32>
    %cst_10 = arith.constant 0.000000e+00 : f32
    %cst_11 = arith.constant 6.000000e+00 : f32
    %15 = vector.broadcast %cst_10 : f32 to vector<256x128xf32>
    %16 = arith.maximumf %15, %14 : vector<256x128xf32>
    %17 = vector.broadcast %cst_11 : f32 to vector<256x128xf32>
    %18 = arith.minimumf %17, %16 : vector<256x128xf32>
    %19 = vector.shape_cast %18 : vector<256x128xf32> to vector<16x16x128xf32>
    %c1 = arith.constant 1 : index
    %c8 = arith.constant 8 : index
    %c0_12 = arith.constant 0 : index
    %20 = vector.load %arg13[%c1, %c8, %c0_12] : memref<18x25x128xf32, #tpu.memory_space<vmem>>, vector<16x16x128xf32>
    tpu.vector_store %arg13[%c1, %c8, %c0_12], %19 {strides = array<i32>} : memref<18x25x128xf32, #tpu.memory_space<vmem>>, vector<16x16x128xf32>,
    %c0_13 = arith.constant 0 : index
    %c0_14 = arith.constant 0 : index
    %c0_15 = arith.constant 0 : index
    %21 = vector.load %arg6[%c0_13, %c0_14, %c0_15] : memref<3x3x128xf32, #tpu.memory_space<vmem>>, vector<3x3x128xf32>
    %c0_16 = arith.constant 0 : index
    %c0_17 = arith.constant 0 : index
    %22 = vector.load %arg7[%c0_16, %c0_17] : memref<1x128xf32, #tpu.memory_space<vmem>>, vector<1x128xf32>
    %c0_18 = arith.constant 0 : index
    %c0_19 = arith.constant 0 : index
    %23 = vector.load %arg8[%c0_18, %c0_19] : memref<1x128xf32, #tpu.memory_space<vmem>>, vector<1x128xf32>
    %c0_20 = arith.constant 0 : index
    %c7 = arith.constant 7 : index
    %c0_21 = arith.constant 0 : index
    %24 = vector.load %arg13[%c0_20, %c7, %c0_21] : memref<18x25x128xf32, #tpu.memory_space<vmem>>, vector<16x16x128xf32>
    %25 = vector.extract_strided_slice %21 {offsets = [0, 0, 0], sizes = [1, 1, 128], strides = [1, 1, 1]} : vector<3x3x128xf32> to vector<1x1x128xf32>
    %26 = vector.broadcast %25 : vector<1x1x128xf32> to vector<16x16x128xf32>
    %27 = arith.mulf %24, %26 : vector<16x16x128xf32>
    %c0_22 = arith.constant 0 : index
    %c8_23 = arith.constant 8 : index
    %c0_24 = arith.constant 0 : index
    %28 = vector.load %arg13[%c0_22, %c8_23, %c0_24] : memref<18x25x128xf32, #tpu.memory_space<vmem>>, vector<16x16x128xf32>
    %29 = vector.extract_strided_slice %21 {offsets = [0, 1, 0], sizes = [1, 1, 128], strides = [1, 1, 1]} : vector<3x3x128xf32> to vector<1x1x128xf32>
    %30 = vector.broadcast %29 : vector<1x1x128xf32> to vector<16x16x128xf32>
    %31 = arith.mulf %28, %30 : vector<16x16x128xf32>
    %32 = arith.addf %27, %31 : vector<16x16x128xf32>
    %c0_25 = arith.constant 0 : index
    %c9 = arith.constant 9 : index
    %c0_26 = arith.constant 0 : index
    %33 = vector.load %arg13[%c0_25, %c9, %c0_26] : memref<18x25x128xf32, #tpu.memory_space<vmem>>, vector<16x16x128xf32>
    %34 = vector.extract_strided_slice %21 {offsets = [0, 2, 0], sizes = [1, 1, 128], strides = [1, 1, 1]} : vector<3x3x128xf32> to vector<1x1x128xf32>
    %35 = vector.broadcast %34 : vector<1x1x128xf32> to vector<16x16x128xf32>
    %36 = arith.mulf %33, %35 : vector<16x16x128xf32>
    %37 = arith.addf %32, %36 : vector<16x16x128xf32>
    %c1_27 = arith.constant 1 : index
    %c7_28 = arith.constant 7 : index
    %c0_29 = arith.constant 0 : index
    %38 = vector.load %arg13[%c1_27, %c7_28, %c0_29] : memref<18x25x128xf32, #tpu.memory_space<vmem>>, vector<16x16x128xf32>
    %39 = vector.extract_strided_slice %21 {offsets = [1, 0, 0], sizes = [1, 1, 128], strides = [1, 1, 1]} : vector<3x3x128xf32> to vector<1x1x128xf32>
    %40 = vector.broadcast %39 : vector<1x1x128xf32> to vector<16x16x128xf32>
    %41 = arith.mulf %38, %40 : vector<16x16x128xf32>
    %42 = arith.addf %37, %41 : vector<16x16x128xf32>
    %c1_30 = arith.constant 1 : index
    %c8_31 = arith.constant 8 : index
    %c0_32 = arith.constant 0 : index
    %43 = vector.load %arg13[%c1_30, %c8_31, %c0_32] : memref<18x25x128xf32, #tpu.memory_space<vmem>>, vector<16x16x128xf32>
    %44 = vector.extract_strided_slice %21 {offsets = [1, 1, 0], sizes = [1, 1, 128], strides = [1, 1, 1]} : vector<3x3x128xf32> to vector<1x1x128xf32>
    %45 = vector.broadcast %44 : vector<1x1x128xf32> to vector<16x16x128xf32>
    %46 = arith.mulf %43, %45 : vector<16x16x128xf32>
    %47 = arith.addf %42, %46 : vector<16x16x128xf32>
    %c1_33 = arith.constant 1 : index
    %c9_34 = arith.constant 9 : index
    %c0_35 = arith.constant 0 : index
    %48 = vector.load %arg13[%c1_33, %c9_34, %c0_35] : memref<18x25x128xf32, #tpu.memory_space<vmem>>, vector<16x16x128xf32>
    %49 = vector.extract_strided_slice %21 {offsets = [1, 2, 0], sizes = [1, 1, 128], strides = [1, 1, 1]} : vector<3x3x128xf32> to vector<1x1x128xf32>
    %50 = vector.broadcast %49 : vector<1x1x128xf32> to vector<16x16x128xf32>
    %51 = arith.mulf %48, %50 : vector<16x16x128xf32>
    %52 = arith.addf %47, %51 : vector<16x16x128xf32>
    %c2 = arith.constant 2 : index
    %c7_36 = arith.constant 7 : index
    %c0_37 = arith.constant 0 : index
    %53 = vector.load %arg13[%c2, %c7_36, %c0_37] : memref<18x25x128xf32, #tpu.memory_space<vmem>>, vector<16x16x128xf32>
    %54 = vector.extract_strided_slice %21 {offsets = [2, 0, 0], sizes = [1, 1, 128], strides = [1, 1, 1]} : vector<3x3x128xf32> to vector<1x1x128xf32>
    %55 = vector.broadcast %54 : vector<1x1x128xf32> to vector<16x16x128xf32>
    %56 = arith.mulf %53, %55 : vector<16x16x128xf32>
    %57 = arith.addf %52, %56 : vector<16x16x128xf32>
    %c2_38 = arith.constant 2 : index
    %c8_39 = arith.constant 8 : index
    %c0_40 = arith.constant 0 : index
    %58 = vector.load %arg13[%c2_38, %c8_39, %c0_40] : memref<18x25x128xf32, #tpu.memory_space<vmem>>, vector<16x16x128xf32>
    %59 = vector.extract_strided_slice %21 {offsets = [2, 1, 0], sizes = [1, 1, 128], strides = [1, 1, 1]} : vector<3x3x128xf32> to vector<1x1x128xf32>
    %60 = vector.broadcast %59 : vector<1x1x128xf32> to vector<16x16x128xf32>
    %61 = arith.mulf %58, %60 : vector<16x16x128xf32>
    %62 = arith.addf %57, %61 : vector<16x16x128xf32>
    %c2_41 = arith.constant 2 : index
    %c9_42 = arith.constant 9 : index
    %c0_43 = arith.constant 0 : index
    %63 = vector.load %arg13[%c2_41, %c9_42, %c0_43] : memref<18x25x128xf32, #tpu.memory_space<vmem>>, vector<16x16x128xf32>
    %64 = vector.extract_strided_slice %21 {offsets = [2, 2, 0], sizes = [1, 1, 128], strides = [1, 1, 1]} : vector<3x3x128xf32> to vector<1x1x128xf32>
    %65 = vector.broadcast %64 : vector<1x1x128xf32> to vector<16x16x128xf32>
    %66 = arith.mulf %63, %65 : vector<16x16x128xf32>
    %67 = arith.addf %62, %66 : vector<16x16x128xf32>
    %68 = vector.shape_cast %22 : vector<1x128xf32> to vector<1x1x128xf32>
    %69 = vector.broadcast %68 : vector<1x1x128xf32> to vector<16x16x128xf32>
    %70 = arith.mulf %67, %69 : vector<16x16x128xf32>
    %71 = vector.shape_cast %23 : vector<1x128xf32> to vector<1x1x128xf32>
    %72 = vector.broadcast %71 : vector<1x1x128xf32> to vector<16x16x128xf32>
    %73 = arith.addf %70, %72 : vector<16x16x128xf32>
    %cst_44 = arith.constant 0.000000e+00 : f32
    %cst_45 = arith.constant 6.000000e+00 : f32
    %74 = vector.broadcast %cst_44 : f32 to vector<16x16x128xf32>
    %75 = arith.maximumf %74, %73 : vector<16x16x128xf32>
    %76 = vector.broadcast %cst_45 : f32 to vector<16x16x128xf32>
    %77 = arith.minimumf %76, %75 : vector<16x16x128xf32>
    %78 = vector.shape_cast %77 : vector<16x16x128xf32> to vector<256x128xf32>
    %79 = arith.truncf %78 : vector<256x128xf32> to vector<256x128xbf16>
    %c0_46 = arith.constant 0 : index
    %c0_47 = arith.constant 0 : index
    %80 = vector.load %arg9[%c0_46, %c0_47] : memref<128x128xbf16, #tpu.memory_space<vmem>>, vector<128x128xbf16>
    %cst_48 = arith.constant dense<0.000000e+00> : vector<256x128xf32>
    %81 = tpu.matmul %79, %80, %cst_48 {dimension_numbers = #tpu.dot_dimension_numbers<[1], [0], [0], [1], [0, 0, 1, 1], [], []>} : vector<256x128xbf16>, vector<128x128xbf16>, vector<256x128xf32> -> vector<256x128xf32>
    %c0_49 = arith.constant 0 : index
    %c0_50 = arith.constant 0 : index
    %82 = vector.load %arg10[%c0_49, %c0_50] : memref<1x128xf32, #tpu.memory_space<vmem>>, vector<1x128xf32>
    %83 = vector.broadcast %82 : vector<1x128xf32> to vector<256x128xf32>
    %84 = arith.mulf %81, %83 : vector<256x128xf32>
    %c0_51 = arith.constant 0 : index
    %c0_52 = arith.constant 0 : index
    %85 = vector.load %arg11[%c0_51, %c0_52] : memref<1x128xf32, #tpu.memory_space<vmem>>, vector<1x128xf32>
    %86 = vector.broadcast %85 : vector<1x128xf32> to vector<256x128xf32>
    %87 = arith.addf %84, %86 : vector<256x128xf32>
    %c0_53 = arith.constant 0 : index
    %c0_54 = arith.constant 0 : index
    %c0_55 = arith.constant 0 : index
    %c0_56 = arith.constant 0 : index
    %88 = vector.load %arg2[%c0_53, %c0_54, %c0_55, %c0_56] : memref<1x16x16x128xf32, #tpu.memory_space<vmem>>, vector<1x16x16x128xf32>
    %89 = vector.shape_cast %88 : vector<1x16x16x128xf32> to vector<16x16x128xf32>
    %90 = vector.shape_cast %89 : vector<16x16x128xf32> to vector<256x128xf32>
    %91 = arith.addf %87, %90 : vector<256x128xf32>
    %92 = vector.shape_cast %91 : vector<256x128xf32> to vector<1x16x16x128xf32>
    %c0_57 = arith.constant 0 : index
    %c0_58 = arith.constant 0 : index
    %c0_59 = arith.constant 0 : index
    %c0_60 = arith.constant 0 : index
    %93 = vector.load %arg12[%c0_57, %c0_58, %c0_59, %c0_60] : memref<1x16x16x128xf32, #tpu.memory_space<vmem>>, vector<1x16x16x128xf32>
    tpu.vector_store %arg12[%c0_57, %c0_58, %c0_59, %c0_60], %92 {strides = array<i32>} : memref<1x16x16x128xf32, #tpu.memory_space<vmem>>, vector<1x16x16x128xf32>,
    return
  }
  func.func @transform_0(%arg0: i32, %arg1: i32) -> (i32, i32, i32, i32) {
    %c0_i32 = arith.constant 0 : i32
    %c0_i32_0 = arith.constant 0 : i32
    %c0_i32_1 = arith.constant 0 : i32
    %c0_i32_2 = arith.constant 0 : i32
    return %arg0, %c0_i32, %c0_i32_0, %c0_i32_1 : i32, i32, i32, i32
  }
  func.func @transform_1(%arg0: i32, %arg1: i32) -> (i32, i32) {
    %c0_i32 = arith.constant 0 : i32
    %c0_i32_0 = arith.constant 0 : i32
    return %c0_i32, %arg1 : i32, i32
  }
  func.func @transform_2(%arg0: i32, %arg1: i32) -> (i32, i32) {
    %c0_i32 = arith.constant 0 : i32
    %c0_i32_0 = arith.constant 0 : i32
    return %c0_i32, %arg1 : i32, i32
  }
  func.func @transform_3(%arg0: i32, %arg1: i32) -> (i32, i32) {
    %c0_i32 = arith.constant 0 : i32
    %c0_i32_0 = arith.constant 0 : i32
    return %c0_i32, %arg1 : i32, i32
  }
  func.func @transform_4(%arg0: i32, %arg1: i32) -> (i32, i32, i32) {
    %c0_i32 = arith.constant 0 : i32
    %c0_i32_0 = arith.constant 0 : i32
    %c0_i32_1 = arith.constant 0 : i32
    return %c0_i32, %c0_i32_0, %arg1 : i32, i32, i32
  }
  func.func @transform_5(%arg0: i32, %arg1: i32) -> (i32, i32) {
    %c0_i32 = arith.constant 0 : i32
    %c0_i32_0 = arith.constant 0 : i32
    return %c0_i32, %arg1 : i32, i32
  }
  func.func @transform_6(%arg0: i32, %arg1: i32) -> (i32, i32) {
    %c0_i32 = arith.constant 0 : i32
    %c0_i32_0 = arith.constant 0 : i32
    return %c0_i32, %arg1 : i32, i32
  }
  func.func @transform_7(%arg0: i32, %arg1: i32) -> (i32, i32) {
    %c0_i32 = arith.constant 0 : i32
    %c0_i32_0 = arith.constant 0 : i32
    return %arg1, %c0_i32 : i32, i32
  }
  func.func @transform_8(%arg0: i32, %arg1: i32) -> (i32, i32) {
    %c0_i32 = arith.constant 0 : i32
    %c0_i32_0 = arith.constant 0 : i32
    %c0_i32_1 = arith.constant 0 : i32
    return %c0_i32, %c0_i32_0 : i32, i32
  }
  func.func @transform_9(%arg0: i32, %arg1: i32) -> (i32, i32) {
    %c0_i32 = arith.constant 0 : i32
    %c0_i32_0 = arith.constant 0 : i32
    %c0_i32_1 = arith.constant 0 : i32
    return %c0_i32, %c0_i32_0 : i32, i32
  }
  func.func @transform_10(%arg0: i32, %arg1: i32) -> (i32, i32, i32, i32) {
    %c0_i32 = arith.constant 0 : i32
    %c0_i32_0 = arith.constant 0 : i32
    %c0_i32_1 = arith.constant 0 : i32
    %c0_i32_2 = arith.constant 0 : i32
    return %arg0, %c0_i32, %c0_i32_0, %c0_i32_1 : i32, i32, i32, i32
  }
}

</mosaic_0001>

<llo_original>
// kernel: mbconv_forward.1
$region0: #{mbconv_forward.1}
  #allocation0 [shape = 'u32[]', space=smem, size = 0x4, offset = 0x4, fixed_abs, tag = 'smem constant byte address 0x4 - core index']
  #allocation1 [shape = 'u32[72,128]{1,0:T(1,128)}', space=vmem, size = 0x9000, scoped, tag = 'internal scratch']
  #allocation2 [shape = 'f32[18,25,128]{2,1,0:T(8,128)}', space=vmem, size = 0x48000, scoped, tag = 'scratch operand']
  %s0 = inlined_call_operand.vmem [shape: f32[2,16,16,128], index: 0, kind: input, shape index: {}]
  %s1 = inlined_call_operand.vmem [shape: bf16[128,128], index: 1, kind: input, shape index: {}]
  %s2 = inlined_call_operand.vmem [shape: f32[1,128], index: 2, kind: input, shape index: {}]
  %s3 = inlined_call_operand.vmem [shape: f32[1,128], index: 3, kind: input, shape index: {}]
  %s4 = inlined_call_operand.vmem [shape: f32[3,3,128], index: 4, kind: input, shape index: {}]
  %s5 = inlined_call_operand.vmem [shape: f32[1,128], index: 5, kind: input, shape index: {}]
  %s6 = inlined_call_operand.vmem [shape: f32[1,128], index: 6, kind: input, shape index: {}]
  %s7 = inlined_call_operand.vmem [shape: bf16[128,128], index: 7, kind: input, shape index: {}]
  %s8 = inlined_call_operand.vmem [shape: f32[1,128], index: 8, kind: input, shape index: {}]
  %s9 = inlined_call_operand.vmem [shape: f32[1,128], index: 9, kind: input, shape index: {}]
  %s10 = inlined_call_operand.vmem [shape: f32[2,16,16,128], index: 10, kind: output, shape index: {}]
  %s11 = sld [smem:[#allocation0]]
  $region77: #{mbconv_forward.1} parent=0
    _
  %s13 = ssub.s32 1, %s11
  %s14 = scalar_select 0, %s13, %s11
  loop: start=0, step=1, limit=4
  $region2: #{mbconv_forward.1} parent=0 // loop_pre_header
    _
  $region3: #{mbconv_forward.1} parent=0 // loop_header
    %s16 = sphi 0, %s20
    %p17 = scmp.ge.s32.totalorder %s16, 4
    %s23 = sphi 0, %s35
    %s24 = sphi 0, %s31
    %s25 = sphi 0, %s23
    %s26 = sphi 0, %s24
    %s27 = sphi 0, %s25
    %s28 = sphi 0, %s26
    %s38 = sphi 0, %s40
    %s41 = sphi 0, %s38
    %s42 = sphi 0, %s41
    %s58 = sphi 0, %s42
    %s64 = sphi 0, %s66
    %s67 = sphi 0, %s64
    %s68 = sphi 0, %s67
    %s84 = sphi 0, %s68
    %s90 = sphi 0, %s92
    %s93 = sphi 0, %s90
    %s94 = sphi 0, %s93
    %s110 = sphi 0, %s94
    %s116 = sphi 0, %s118
    %s119 = sphi 0, %s116
    %s120 = sphi 0, %s119
    %s136 = sphi 0, %s120
    %s142 = sphi 0, %s144
    %s145 = sphi 0, %s142
    %s146 = sphi 0, %s145
    %s162 = sphi 0, %s146
    %s168 = sphi 0, %s170
    %s171 = sphi 0, %s168
    %s172 = sphi 0, %s171
    %s188 = sphi 0, %s172
    %s194 = sphi 0, %s196
    %s197 = sphi 0, %s194
    %s198 = sphi 0, %s197
    %s214 = sphi 0, %s198
    %s220 = sphi 0, %s222
    %s223 = sphi 0, %s220
    %s224 = sphi 0, %s223
    %s240 = sphi 0, %s224
    %s244 = sphi 0, %s244
    %s246 = sphi 0, %s244
    %s247 = sphi 0, %s246
    %s261 = sphi 0, %s247
    %s265 = sphi 0, %s265
    %s267 = sphi 0, %s265
    %s268 = sphi 0, %s267
    %s282 = sphi 0, %s268
    %s288 = sphi 0, %s290
    %s291 = sphi 0, %s288
    %s292 = sphi 0, %s291
    %s308 = sphi 0, %s292
  $region4: #{mbconv_forward.1} parent=0 // loop_header_branch
    %19 = sbr.rel (%p17) target = $region8
  $region5: #{mbconv_forward.1} parent=0 // loop_body
    %s21 = ssub.s32 %s16, 1
    %s22 = ssub.s32 %s16, 2
    %s29 = sadd.s32 1, %s24
    %p30 = scmp.ge.s32.totalorder %s29, 1
    %s31 = scalar_select %p30, 0, %s29
    %s32 = sadd.s32 1, %s23
    %s33 = scalar_select %p30, %s32, %s23
    %p34 = scmp.ge.s32.totalorder %s33, 2
    %s35 = scalar_select %p34, 0, %s33
    %s36 = ssub.s32 %s23, %s35
    %p37 = scmp.eq.s32.totalorder %s36, 0
    %s39 = sadd.s32 %s38, 1
    %s40 = scalar_select %p37, %s38, %s39
    %p43 = pneg %p37
    %p44 = scmp.eq.s32.totalorder %s16, 1
    %p45 = por %p43, %p44
    %p46 = scmp.ne.s32.totalorder %s38, %s41
    %p47 = scmp.eq.s32.totalorder %s16, 0
    %p48 = por %p46, %p47
    %p49 = scmp.ne.s32.totalorder %s38, %s41
    %p50 = scmp.eq.s32.totalorder %s21, 1
    %p51 = por %p49, %p50
    %p52 = scmp.ne.s32.totalorder %s41, %s42
    %p53 = scmp.eq.s32.totalorder %s21, 0
    %p54 = por %p52, %p53
    %p55 = scmp.ne.s32.totalorder %s41, %s42
    %p56 = scmp.eq.s32.totalorder %s22, 1
    %p57 = por %p55, %p56
    %p59 = scmp.ne.s32.totalorder %s42, %s58
    %p60 = scmp.eq.s32.totalorder %s22, 0
    %p61 = por %p59, %p60
    %s62 = ssub.s32 %s24, %s31
    %p63 = scmp.eq.s32.totalorder %s62, 0
    %s65 = sadd.s32 %s64, 1
    %s66 = scalar_select %p63, %s64, %s65
    %p69 = pneg %p63
    %p70 = scmp.eq.s32.totalorder %s16, 1
    %p71 = por %p69, %p70
    %p72 = scmp.ne.s32.totalorder %s64, %s67
    %p73 = scmp.eq.s32.totalorder %s16, 0
    %p74 = por %p72, %p73
    %p75 = scmp.ne.s32.totalorder %s64, %s67
    %p76 = scmp.eq.s32.totalorder %s21, 1
    %p77 = por %p75, %p76
    %p78 = scmp.ne.s32.totalorder %s67, %s68
    %p79 = scmp.eq.s32.totalorder %s21, 0
    %p80 = por %p78, %p79
    %p81 = scmp.ne.s32.totalorder %s67, %s68
    %p82 = scmp.eq.s32.totalorder %s22, 1
    %p83 = por %p81, %p82
    %p85 = scmp.ne.s32.totalorder %s68, %s84
    %p86 = scmp.eq.s32.totalorder %s22, 0
    %p87 = por %p85, %p86
    %s88 = ssub.s32 %s24, %s31
    %p89 = scmp.eq.s32.totalorder %s88, 0
    %s91 = sadd.s32 %s90, 1
    %s92 = scalar_select %p89, %s90, %s91
    %p95 = pneg %p89
    %p96 = scmp.eq.s32.totalorder %s16, 1
    %p97 = por %p95, %p96
    %p98 = scmp.ne.s32.totalorder %s90, %s93
    %p99 = scmp.eq.s32.totalorder %s16, 0
    %p100 = por %p98, %p99
    %p101 = scmp.ne.s32.totalorder %s90, %s93
    %p102 = scmp.eq.s32.totalorder %s21, 1
    %p103 = por %p101, %p102
    %p104 = scmp.ne.s32.totalorder %s93, %s94
    %p105 = scmp.eq.s32.totalorder %s21, 0
    %p106 = por %p104, %p105
    %p107 = scmp.ne.s32.totalorder %s93, %s94
    %p108 = scmp.eq.s32.totalorder %s22, 1
    %p109 = por %p107, %p108
    %p111 = scmp.ne.s32.totalorder %s94, %s110
    %p112 = scmp.eq.s32.totalorder %s22, 0
    %p113 = por %p111, %p112
    %s114 = ssub.s32 %s24, %s31
    %p115 = scmp.eq.s32.totalorder %s114, 0
    %s117 = sadd.s32 %s116, 1
    %s118 = scalar_select %p115, %s116, %s117
    %p121 = pneg %p115
    %p122 = scmp.eq.s32.totalorder %s16, 1
    %p123 = por %p121, %p122
    %p124 = scmp.ne.s32.totalorder %s116, %s119
    %p125 = scmp.eq.s32.totalorder %s16, 0
    %p126 = por %p124, %p125
    %p127 = scmp.ne.s32.totalorder %s116, %s119
    %p128 = scmp.eq.s32.totalorder %s21, 1
    %p129 = por %p127, %p128
    %p130 = scmp.ne.s32.totalorder %s119, %s120
    %p131 = scmp.eq.s32.totalorder %s21, 0
    %p132 = por %p130, %p131
    %p133 = scmp.ne.s32.totalorder %s119, %s120
    %p134 = scmp.eq.s32.totalorder %s22, 1
    %p135 = por %p133, %p134
    %p137 = scmp.ne.s32.totalorder %s120, %s136
    %p138 = scmp.eq.s32.totalorder %s22, 0
    %p139 = por %p137, %p138
    %s140 = ssub.s32 %s24, %s31
    %p141 = scmp.eq.s32.totalorder %s140, 0
    %s143 = sadd.s32 %s142, 1
    %s144 = scalar_select %p141, %s142, %s143
    %p147 = pneg %p141
    %p148 = scmp.eq.s32.totalorder %s16, 1
    %p149 = por %p147, %p148
    %p150 = scmp.ne.s32.totalorder %s142, %s145
    %p151 = scmp.eq.s32.totalorder %s16, 0
    %p152 = por %p150, %p151
    %p153 = scmp.ne.s32.totalorder %s142, %s145
    %p154 = scmp.eq.s32.totalorder %s21, 1
    %p155 = por %p153, %p154
    %p156 = scmp.ne.s32.totalorder %s145, %s146
    %p157 = scmp.eq.s32.totalorder %s21, 0
    %p158 = por %p156, %p157
    %p159 = scmp.ne.s32.totalorder %s145, %s146
    %p160 = scmp.eq.s32.totalorder %s22, 1
    %p161 = por %p159, %p160
    %p163 = scmp.ne.s32.totalorder %s146, %s162
    %p164 = scmp.eq.s32.totalorder %s22, 0
    %p165 = por %p163, %p164
    %s166 = ssub.s32 %s24, %s31
    %p167 = scmp.eq.s32.totalorder %s166, 0
    %s169 = sadd.s32 %s168, 1
    %s170 = scalar_select %p167, %s168, %s169
    %p173 = pneg %p167
    %p174 = scmp.eq.s32.totalorder %s16, 1
    %p175 = por %p173, %p174
    %p176 = scmp.ne.s32.totalorder %s168, %s171
    %p177 = scmp.eq.s32.totalorder %s16, 0
    %p178 = por %p176, %p177
    %p179 = scmp.ne.s32.totalorder %s168, %s171
    %p180 = scmp.eq.s32.totalorder %s21, 1
    %p181 = por %p179, %p180
    %p182 = scmp.ne.s32.totalorder %s171, %s172
    %p183 = scmp.eq.s32.totalorder %s21, 0
    %p184 = por %p182, %p183
    %p185 = scmp.ne.s32.totalorder %s171, %s172
    %p186 = scmp.eq.s32.totalorder %s22, 1
    %p187 = por %p185, %p186
    %p189 = scmp.ne.s32.totalorder %s172, %s188
    %p190 = scmp.eq.s32.totalorder %s22, 0
    %p191 = por %p189, %p190
    %s192 = ssub.s32 %s24, %s31
    %p193 = scmp.eq.s32.totalorder %s192, 0
    %s195 = sadd.s32 %s194, 1
    %s196 = scalar_select %p193, %s194, %s195
    %p199 = pneg %p193
    %p200 = scmp.eq.s32.totalorder %s16, 1
    %p201 = por %p199, %p200
    %p202 = scmp.ne.s32.totalorder %s194, %s197
    %p203 = scmp.eq.s32.totalorder %s16, 0
    %p204 = por %p202, %p203
    %p205 = scmp.ne.s32.totalorder %s194, %s197
    %p206 = scmp.eq.s32.totalorder %s21, 1
    %p207 = por %p205, %p206
    %p208 = scmp.ne.s32.totalorder %s197, %s198
    %p209 = scmp.eq.s32.totalorder %s21, 0
    %p210 = por %p208, %p209
    %p211 = scmp.ne.s32.totalorder %s197, %s198
    %p212 = scmp.eq.s32.totalorder %s22, 1
    %p213 = por %p211, %p212
    %p215 = scmp.ne.s32.totalorder %s198, %s214
    %p216 = scmp.eq.s32.totalorder %s22, 0
    %p217 = por %p215, %p216
    %s218 = ssub.s32 %s24, %s31
    %p219 = scmp.eq.s32.totalorder %s218, 0
    %s221 = sadd.s32 %s220, 1
    %s222 = scalar_select %p219, %s220, %s221
    %p225 = pneg %p219
    %p226 = scmp.eq.s32.totalorder %s16, 1
    %p227 = por %p225, %p226
    %p228 = scmp.ne.s32.totalorder %s220, %s223
    %p229 = scmp.eq.s32.totalorder %s16, 0
    %p230 = por %p228, %p229
    %p231 = scmp.ne.s32.totalorder %s220, %s223
    %p232 = scmp.eq.s32.totalorder %s21, 1
    %p233 = por %p231, %p232
    %p234 = scmp.ne.s32.totalorder %s223, %s224
    %p235 = scmp.eq.s32.totalorder %s21, 0
    %p236 = por %p234, %p235
    %p237 = scmp.ne.s32.totalorder %s223, %s224
    %p238 = scmp.eq.s32.totalorder %s22, 1
    %p239 = por %p237, %p238
    %p241 = scmp.ne.s32.totalorder %s224, %s240
    %p242 = scmp.eq.s32.totalorder %s22, 0
    %p243 = por %p241, %p242
    %s245 = sadd.s32 %s244, 1
    %p248 = scmp.eq.s32.totalorder %s16, 1
    %p249 = scmp.ne.s32.totalorder %s244, %s246
    %p250 = scmp.eq.s32.totalorder %s16, 0
    %p251 = por %p249, %p250
    %p252 = scmp.ne.s32.totalorder %s244, %s246
    %p253 = scmp.eq.s32.totalorder %s21, 1
    %p254 = por %p252, %p253
    %p255 = scmp.ne.s32.totalorder %s246, %s247
    %p256 = scmp.eq.s32.totalorder %s21, 0
    %p257 = por %p255, %p256
    %p258 = scmp.ne.s32.totalorder %s246, %s247
    %p259 = scmp.eq.s32.totalorder %s22, 1
    %p260 = por %p258, %p259
    %p262 = scmp.ne.s32.totalorder %s247, %s261
    %p263 = scmp.eq.s32.totalorder %s22, 0
    %p264 = por %p262, %p263
    %s266 = sadd.s32 %s265, 1
    %p269 = scmp.eq.s32.totalorder %s16, 1
    %p270 = scmp.ne.s32.totalorder %s265, %s267
    %p271 = scmp.eq.s32.totalorder %s16, 0
    %p272 = por %p270, %p271
    %p273 = scmp.ne.s32.totalorder %s265, %s267
    %p274 = scmp.eq.s32.totalorder %s21, 1
    %p275 = por %p273, %p274
    %p276 = scmp.ne.s32.totalorder %s267, %s268
    %p277 = scmp.eq.s32.totalorder %s21, 0
    %p278 = por %p276, %p277
    %p279 = scmp.ne.s32.totalorder %s267, %s268
    %p280 = scmp.eq.s32.totalorder %s22, 1
    %p281 = por %p279, %p280
    %p283 = scmp.ne.s32.totalorder %s268, %s282
    %p284 = scmp.eq.s32.totalorder %s22, 0
    %p285 = por %p283, %p284
    %s286 = ssub.s32 %s23, %s35
    %p287 = scmp.eq.s32.totalorder %s286, 0
    %s289 = sadd.s32 %s288, 1
    %s290 = scalar_select %p287, %s288, %s289
    %p293 = pneg %p287
    %p294 = scmp.eq.s32.totalorder %s16, 1
    %p295 = por %p293, %p294
    %p296 = scmp.ne.s32.totalorder %s288, %s291
    %p297 = scmp.eq.s32.totalorder %s16, 0
    %p298 = por %p296, %p297
    %p299 = scmp.ne.s32.totalorder %s288, %s291
    %p300 = scmp.eq.s32.totalorder %s21, 1
    %p301 = por %p299, %p300
    %p302 = scmp.ne.s32.totalorder %s291, %s292
    %p303 = scmp.eq.s32.totalorder %s21, 0
    %p304 = por %p302, %p303
    %p305 = scmp.ne.s32.totalorder %s291, %s292
    %p306 = scmp.eq.s32.totalorder %s22, 1
    %p307 = por %p305, %p306
    %p309 = scmp.ne.s32.totalorder %s292, %s308
    %p310 = scmp.eq.s32.totalorder %s22, 0
    %p311 = por %p309, %p310
    %p312 = scmp.le.s32.totalorder 1, %s16
    %p313 = scmp.lt.s32.totalorder %s16, 3
    %p314 = pnand %p312, %p313
    %p315 = pneg %p314
    // Predicated region
    $region9: #{mbconv_forward.1} parent=5 // pred_check
      _
    $region10: #{mbconv_forward.1} parent=5 // pred_check_branch
      %317 = sbr.rel (%p314) target = $region12
    $region11: #{mbconv_forward.1} parent=5 // pred_region
      %s318 = ssub.s32 %s16, 1
      // Predicated region
      $region13: #{mbconv_forward.1} parent=11 // pred_check
        %p319 = pneg %p80
      $region14: #{mbconv_forward.1} parent=11 // pred_check_branch
        %321 = sbr.rel (%p319) target = $region16
      $region15: #{mbconv_forward.1} parent=11 // pred_region
        %p322 = scmp.lt.s32.totalorder %s26, 0
        %s323 = scalar_select %p322, %s26, 0
        %s324 = smul.addr %s323, 4
        %s325 = scalar_lea.vmem %s1, %s324
      $region16: #{mbconv_forward.1} parent=11 // pred_fallthru
        _
      // Predicated region
      $region17: #{mbconv_forward.1} parent=11 // pred_check
        %p326 = pneg %p106
      $region18: #{mbconv_forward.1} parent=11 // pred_check_branch
        %328 = sbr.rel (%p326) target = $region20
      $region19: #{mbconv_forward.1} parent=11 // pred_region
        %p329 = scmp.lt.s32.totalorder %s26, 0
        %s330 = scalar_select %p329, %s26, 0
        %s331 = scalar_lea.vmem %s2, %s330
      $region20: #{mbconv_forward.1} parent=11 // pred_fallthru
        _
      // Predicated region
      $region21: #{mbconv_forward.1} parent=11 // pred_check
        %p332 = pneg %p132
      $region22: #{mbconv_forward.1} parent=11 // pred_check_branch
        %334 = sbr.rel (%p332) target = $region24
      $region23: #{mbconv_forward.1} parent=11 // pred_region
        %p335 = scmp.lt.s32.totalorder %s26, 0
        %s336 = scalar_select %p335, %s26, 0
        %s337 = scalar_lea.vmem %s3, %s336
      $region24: #{mbconv_forward.1} parent=11 // pred_fallthru
        _
      // Predicated region
      $region25: #{mbconv_forward.1} parent=11 // pred_check
        %p338 = pneg %p158
      $region26: #{mbconv_forward.1} parent=11 // pred_check_branch
        %340 = sbr.rel (%p338) target = $region28
      $region27: #{mbconv_forward.1} parent=11 // pred_region
        %p341 = scmp.lt.s32.totalorder %s26, 0
        %s342 = scalar_select %p341, %s26, 0
        %s343 = smul.addr %s342, 4
        %s344 = scalar_lea.vmem %s4, %s343
      $region28: #{mbconv_forward.1} parent=11 // pred_fallthru
        _
      // Predicated region
      $region29: #{mbconv_forward.1} parent=11 // pred_check
        %p345 = pneg %p184
      $region30: #{mbconv_forward.1} parent=11 // pred_check_branch
        %347 = sbr.rel (%p345) target = $region32
      $region31: #{mbconv_forward.1} parent=11 // pred_region
        %p348 = scmp.lt.s32.totalorder %s26, 0
        %s349 = scalar_select %p348, %s26, 0
        %s350 = scalar_lea.vmem %s5, %s349
      $region32: #{mbconv_forward.1} parent=11 // pred_fallthru
        _
      // Predicated region
      $region33: #{mbconv_forward.1} parent=11 // pred_check
        %p351 = pneg %p210
      $region34: #{mbconv_forward.1} parent=11 // pred_check_branch
        %353 = sbr.rel (%p351) target = $region36
      $region35: #{mbconv_forward.1} parent=11 // pred_region
        %p354 = scmp.lt.s32.totalorder %s26, 0
        %s355 = scalar_select %p354, %s26, 0
        %s356 = scalar_lea.vmem %s6, %s355
      $region36: #{mbconv_forward.1} parent=11 // pred_fallthru
        _
      // Predicated region
      $region37: #{mbconv_forward.1} parent=11 // pred_check
        %p357 = pneg %p236
      $region38: #{mbconv_forward.1} parent=11 // pred_check_branch
        %359 = sbr.rel (%p357) target = $region40
      $region39: #{mbconv_forward.1} parent=11 // pred_region
        %s360 = smul.u32 16, %s26
        %p361 = scmp.lt.s32.totalorder %s360, 15
        %s362 = scalar_select %p361, %s360, 15
        %s363 = smul.addr %s362, 4
        %s364 = scalar_lea.vmem %s7, %s363
        %s365 = smul.u32 16, %s26
      $region40: #{mbconv_forward.1} parent=11 // pred_fallthru
        _
      // Predicated region
      $region41: #{mbconv_forward.1} parent=11 // pred_check
        %p366 = pneg %p257
      $region42: #{mbconv_forward.1} parent=11 // pred_check_branch
        %368 = sbr.rel (%p366) target = $region44
      $region43: #{mbconv_forward.1} parent=11 // pred_region
        _
      $region44: #{mbconv_forward.1} parent=11 // pred_fallthru
        _
      // Predicated region
      $region45: #{mbconv_forward.1} parent=11 // pred_check
        %p369 = pneg %p278
      $region46: #{mbconv_forward.1} parent=11 // pred_check_branch
        %371 = sbr.rel (%p369) target = $region48
      $region47: #{mbconv_forward.1} parent=11 // pred_region
        _
      $region48: #{mbconv_forward.1} parent=11 // pred_fallthru
        _
    $region12: #{mbconv_forward.1} parent=5 // pred_fallthru
      _
    %p372 = scmp.lt.s32.totalorder %s16, 2
    // Predicated region
    $region49: #{mbconv_forward.1} parent=5 // pred_check
      %p373 = pneg %p372
    $region50: #{mbconv_forward.1} parent=5 // pred_check_branch
      %375 = sbr.rel (%p373) target = $region52
    $region51: #{mbconv_forward.1} parent=5 // pred_region
      // Predicated region
      $region53: #{mbconv_forward.1} parent=51 // pred_check
        %p376 = pneg %p48
      $region54: #{mbconv_forward.1} parent=51 // pred_check_branch
        %378 = sbr.rel (%p376) target = $region56
      $region55: #{mbconv_forward.1} parent=51 // pred_region
        %p379 = scmp.lt.s32.totalorder %s23, 1
        %s380 = scalar_select %p379, %s23, 1
        %s381 = smul.addr %s380, 32
        %s382 = smul.addr %s381, 8
        %s383 = scalar_lea.vmem %s0, %s382
      $region56: #{mbconv_forward.1} parent=51 // pred_fallthru
        _
    $region52: #{mbconv_forward.1} parent=5 // pred_fallthru
      _
    %p384 = scmp.le.s32.totalorder 1, %s16
    %p385 = scmp.lt.s32.totalorder %s16, 3
    %p386 = pnand %p384, %p385
    %p387 = pneg %p386
    // Predicated region
    $region57: #{mbconv_forward.1} parent=5 // pred_check
      _
    $region58: #{mbconv_forward.1} parent=5 // pred_check_branch
      %389 = sbr.rel (%p386) target = $region60
    $region59: #{mbconv_forward.1} parent=5 // pred_region
      %s390 = ssub.s32 %s16, 1
      %p391 = scmp.lt.s32.totalorder %s25, 1
      %s392 = scalar_select %p391, %s25, 1
      %s393 = smul.addr %s392, 32
      %s394 = smul.addr %s393, 8
      %s395 = scalar_lea.vmem %s0, %s394
      %p396 = pneg %p54
      %p397 = pneg %p51
      %p398 = scmp.lt.s32.totalorder %s26, 0
      %s399 = scalar_select %p398, %s26, 0
      %s400 = smul.addr %s399, 4
      %s401 = scalar_lea.vmem %s1, %s400
      %p402 = pneg %p80
      %p403 = pneg %p77
      %p404 = scmp.lt.s32.totalorder %s26, 0
      %s405 = scalar_select %p404, %s26, 0
      %s406 = scalar_lea.vmem %s2, %s405
      %p407 = pneg %p106
      %p408 = pneg %p103
      %p409 = scmp.lt.s32.totalorder %s26, 0
      %s410 = scalar_select %p409, %s26, 0
      %s411 = scalar_lea.vmem %s3, %s410
      %p412 = pneg %p132
      %p413 = pneg %p129
      %p414 = scmp.lt.s32.totalorder %s26, 0
      %s415 = scalar_select %p414, %s26, 0
      %s416 = smul.addr %s415, 4
      %s417 = scalar_lea.vmem %s4, %s416
      %p418 = pneg %p158
      %p419 = pneg %p155
      %p420 = scmp.lt.s32.totalorder %s26, 0
      %s421 = scalar_select %p420, %s26, 0
      %s422 = scalar_lea.vmem %s5, %s421
      %p423 = pneg %p184
      %p424 = pneg %p181
      %p425 = scmp.lt.s32.totalorder %s26, 0
      %s426 = scalar_select %p425, %s26, 0
      %s427 = scalar_lea.vmem %s6, %s426
      %p428 = pneg %p210
      %p429 = pneg %p207
      %s430 = smul.u32 16, %s26
      %p431 = scmp.lt.s32.totalorder %s430, 15
      %s432 = scalar_select %p431, %s430, 15
      %s433 = smul.addr %s432, 4
      %s434 = scalar_lea.vmem %s7, %s433
      %p435 = pneg %p236
      %p436 = pneg %p233
      %p437 = pneg %p257
      %p438 = pneg %p254
      %p439 = pneg %p278
      %p440 = pneg %p275
      %p441 = pneg %p304
      %p442 = pneg %p301
      %p443 = scmp.lt.s32.totalorder %s25, 1
      %s444 = scalar_select %p443, %s25, 1
      %s445 = smul.addr %s444, 32
      %s446 = smul.addr %s445, 8
      %s447 = scalar_lea.vmem %s10, %s446
      %p448 = scmp.lt.s32.totalorder %s25, 1
      %s449 = scalar_select %p448, %s25, 1
      %s450 = smul.addr %s449, 32
      %s451 = smul.addr %s450, 8
      %s452 = scalar_lea.vmem %s0, %s451
      %p453 = scmp.lt.s32.totalorder %s26, 0
      %s454 = scalar_select %p453, %s26, 0
      %s455 = smul.addr %s454, 4
      %s456 = scalar_lea.vmem %s1, %s455
      %p457 = scmp.lt.s32.totalorder %s26, 0
      %s458 = scalar_select %p457, %s26, 0
      %s459 = scalar_lea.vmem %s2, %s458
      %p460 = scmp.lt.s32.totalorder %s26, 0
      %s461 = scalar_select %p460, %s26, 0
      %s462 = scalar_lea.vmem %s3, %s461
      %p463 = scmp.lt.s32.totalorder %s26, 0
      %s464 = scalar_select %p463, %s26, 0
      %s465 = smul.addr %s464, 4
      %s466 = scalar_lea.vmem %s4, %s465
      %p467 = scmp.lt.s32.totalorder %s26, 0
      %s468 = scalar_select %p467, %s26, 0
      %s469 = scalar_lea.vmem %s5, %s468
      %p470 = scmp.lt.s32.totalorder %s26, 0
      %s471 = scalar_select %p470, %s26, 0
      %s472 = scalar_lea.vmem %s6, %s471
      %s473 = smul.u32 16, %s26
      %p474 = scmp.lt.s32.totalorder %s473, 15
      %s475 = scalar_select %p474, %s473, 15
      %s476 = smul.addr %s475, 4
      %s477 = scalar_lea.vmem %s7, %s476
      %s478 = smul.u32 16, %s26
      %p479 = scmp.lt.s32.totalorder %s25, 1
      %s480 = scalar_select %p479, %s25, 1
      %s481 = smul.addr %s480, 32
      %s482 = smul.addr %s481, 8
      %s483 = scalar_lea.vmem %s10, %s482
      %p484 = scmp.eq.s32.totalorder %s26, 0
      // Predicated region
      $region61: #{mbconv_forward.1} parent=59 // pred_check
        %p485 = pneg %p484
      $region62: #{mbconv_forward.1} parent=59 // pred_check_branch
        %487 = sbr.rel (%p485) target = $region64
      $region63: #{mbconv_forward.1} parent=59 // pred_region
        %488 = vst [vmem:[#allocation2] sm:$0xff] 0.0
        %489 = vst [vmem:[#allocation2 + $0x8] sm:$0xff] 0.0
        %490 = vst [vmem:[#allocation2 + $0x10] sm:$0xff] 0.0
        %491 = vst [vmem:[#allocation2 + $0x18] sm:$0x1] 0.0
        %s492 = scalar_lea.vmem [#allocation2], 544
        %493 = vst [vmem:[%s492] sm:$0xff] 0.0
        %494 = vst [vmem:[%s492 + $0x8] sm:$0xff] 0.0
        %495 = vst [vmem:[%s492 + $0x10] sm:$0xff] 0.0
        %496 = vst [vmem:[%s492 + $0x18] sm:$0x1] 0.0
        %s497 = scalar_lea.vmem [#allocation2], 32
        %498 = vst [vmem:[%s497] sm:$0xff] 0.0
        %499 = vst [vmem:[%s497 + $0x20] sm:$0xff] 0.0
        %500 = vst [vmem:[%s497 + $0x40] sm:$0xff] 0.0
        %501 = vst [vmem:[%s497 + $0x60] sm:$0xff] 0.0
        %502 = vst [vmem:[%s497 + $0x80] sm:$0xff] 0.0
        %503 = vst [vmem:[%s497 + $0xa0] sm:$0xff] 0.0
        %504 = vst [vmem:[%s497 + $0xc0] sm:$0xff] 0.0
        %505 = vst [vmem:[%s497 + $0xe0] sm:$0xff] 0.0
        %506 = vst [vmem:[%s497 + $0x100] sm:$0xff] 0.0
        %507 = vst [vmem:[%s497 + $0x120] sm:$0xff] 0.0
        %508 = vst [vmem:[%s497 + $0x140] sm:$0xff] 0.0
        %509 = vst [vmem:[%s497 + $0x160] sm:$0xff] 0.0
        %510 = vst [vmem:[%s497 + $0x180] sm:$0xff] 0.0
        %511 = vst [vmem:[%s497 + $0x1a0] sm:$0xff] 0.0
        %512 = vst [vmem:[%s497 + $0x1c0] sm:$0xff] 0.0
        %513 = vst [vmem:[%s497 + $0x1e0] sm:$0xff] 0.0
        %514 = vst [vmem:[%s497 + $0x18] sm:$0x1] 0.0
        %515 = vst [vmem:[%s497 + $0x38] sm:$0x1] 0.0
        %516 = vst [vmem:[%s497 + $0x58] sm:$0x1] 0.0
        %517 = vst [vmem:[%s497 + $0x78] sm:$0x1] 0.0
        %518 = vst [vmem:[%s497 + $0x98] sm:$0x1] 0.0
        %519 = vst [vmem:[%s497 + $0xb8] sm:$0x1] 0.0
        %520 = vst [vmem:[%s497 + $0xd8] sm:$0x1] 0.0
        %521 = vst [vmem:[%s497 + $0xf8] sm:$0x1] 0.0
        %522 = vst [vmem:[%s497 + $0x118] sm:$0x1] 0.0
        %523 = vst [vmem:[%s497 + $0x138] sm:$0x1] 0.0
        %524 = vst [vmem:[%s497 + $0x158] sm:$0x1] 0.0
        %525 = vst [vmem:[%s497 + $0x178] sm:$0x1] 0.0
        %526 = vst [vmem:[%s497 + $0x198] sm:$0x1] 0.0
        %527 = vst [vmem:[%s497 + $0x1b8] sm:$0x1] 0.0
        %528 = vst [vmem:[%s497 + $0x1d8] sm:$0x1] 0.0
        %529 = vst [vmem:[%s497 + $0x1f8] sm:$0x1] 0.0
      $region64: #{mbconv_forward.1} parent=59 // pred_fallthru
        _
      %v530 = vld [vmem:[%s452] sm:$0xff]
      %v531 = vld [vmem:[%s452 + $0x8] sm:$0xff]
      %v532 = vld [vmem:[%s452 + $0x10] sm:$0xff]
      %v533 = vld [vmem:[%s452 + $0x18] sm:$0xff]
      %v534 = vld [vmem:[%s452 + $0x20] sm:$0xff]
      %v535 = vld [vmem:[%s452 + $0x28] sm:$0xff]
      %v536 = vld [vmem:[%s452 + $0x30] sm:$0xff]
      %v537 = vld [vmem:[%s452 + $0x38] sm:$0xff]
      %v538 = vld [vmem:[%s452 + $0x40] sm:$0xff]
      %v539 = vld [vmem:[%s452 + $0x48] sm:$0xff]
      %v540 = vld [vmem:[%s452 + $0x50] sm:$0xff]
      %v541 = vld [vmem:[%s452 + $0x58] sm:$0xff]
      %v542 = vld [vmem:[%s452 + $0x60] sm:$0xff]
      %v543 = vld [vmem:[%s452 + $0x68] sm:$0xff]
      %v544 = vld [vmem:[%s452 + $0x70] sm:$0xff]
      %v545 = vld [vmem:[%s452 + $0x78] sm:$0xff]
      %v546 = vld [vmem:[%s452 + $0x80] sm:$0xff]
      %v547 = vld [vmem:[%s452 + $0x88] sm:$0xff]
      %v548 = vld [vmem:[%s452 + $0x90] sm:$0xff]
      %v549 = vld [vmem:[%s452 + $0x98] sm:$0xff]
      %v550 = vld [vmem:[%s452 + $0xa0] sm:$0xff]
      %v551 = vld [vmem:[%s452 + $0xa8] sm:$0xff]
      %v552 = vld [vmem:[%s452 + $0xb0] sm:$0xff]
      %v553 = vld [vmem:[%s452 + $0xb8] sm:$0xff]
      %v554 = vld [vmem:[%s452 + $0xc0] sm:$0xff]
      %v555 = vld [vmem:[%s452 + $0xc8] sm:$0xff]
      %v556 = vld [vmem:[%s452 + $0xd0] sm:$0xff]
      %v557 = vld [vmem:[%s452 + $0xd8] sm:$0xff]
      %v558 = vld [vmem:[%s452 + $0xe0] sm:$0xff]
      %v559 = vld [vmem:[%s452 + $0xe8] sm:$0xff]
      %v560 = vld [vmem:[%s452 + $0xf0] sm:$0xff]
      %v561 = vld [vmem:[%s452 + $0xf8] sm:$0xff]
      %v562 = vpack.c.bf16 %v531, %v530
      %v563 = vpack.c.bf16 %v533, %v532
      %v564 = vpack.c.bf16 %v535, %v534
      %v565 = vpack.c.bf16 %v537, %v536
      %v566 = vpack.c.bf16 %v539, %v538
      %v567 = vpack.c.bf16 %v541, %v540
      %v568 = vpack.c.bf16 %v543, %v542
      %v569 = vpack.c.bf16 %v545, %v544
      %v570 = vpack.c.bf16 %v547, %v546
      %v571 = vpack.c.bf16 %v549, %v548
      %v572 = vpack.c.bf16 %v551, %v550
      %v573 = vpack.c.bf16 %v553, %v552
      %v574 = vpack.c.bf16 %v555, %v554
      %v575 = vpack.c.bf16 %v557, %v556
      %v576 = vpack.c.bf16 %v559, %v558
      %v577 = vpack.c.bf16 %v561, %v560
      %v578 = vld [vmem:[%s456] sm:$0xf]
      %v579 = vld [vmem:[%s456 + $0x4] sm:$0xf]
      %v580 = vld [vmem:[%s456 + $0x8] sm:$0xf]
      %v581 = vld [vmem:[%s456 + $0xc] sm:$0xf]
      %v582 = vld [vmem:[%s456 + $0x10] sm:$0xf]
      %v583 = vld [vmem:[%s456 + $0x14] sm:$0xf]
      %v584 = vld [vmem:[%s456 + $0x18] sm:$0xf]
      %v585 = vld [vmem:[%s456 + $0x1c] sm:$0xf]
      %v586 = vld [vmem:[%s456 + $0x20] sm:$0xf]
      %v587 = vld [vmem:[%s456 + $0x24] sm:$0xf]
      %v588 = vld [vmem:[%s456 + $0x28] sm:$0xf]
      %v589 = vld [vmem:[%s456 + $0x2c] sm:$0xf]
      %v590 = vld [vmem:[%s456 + $0x30] sm:$0xf]
      %v591 = vld [vmem:[%s456 + $0x34] sm:$0xf]
      %v592 = vld [vmem:[%s456 + $0x38] sm:$0xf]
      %v593 = vld [vmem:[%s456 + $0x3c] sm:$0xf]
      %v610 = vunpack.c.l.b16 %v578
      %v611 = vunpack.c.l.b16 %v579
      %v612 = vunpack.c.l.b16 %v580
      %v613 = vunpack.c.l.b16 %v581
      %v614 = vunpack.c.l.b16 %v582
      %v615 = vunpack.c.l.b16 %v583
      %v616 = vunpack.c.l.b16 %v584
      %v617 = vunpack.c.l.b16 %v585
      %v618 = vunpack.c.l.b16 %v586
      %v619 = vunpack.c.l.b16 %v587
      %v620 = vunpack.c.l.b16 %v588
      %v621 = vunpack.c.l.b16 %v589
      %v622 = vunpack.c.l.b16 %v590
      %v623 = vunpack.c.l.b16 %v591
      %v624 = vunpack.c.l.b16 %v592
      %v625 = vunpack.c.l.b16 %v593
      %v626 = vpack.c.b16 %v611, %v610
      %v627 = vpack.c.b16 %v613, %v612
      %v628 = vpack.c.b16 %v615, %v614
      %v629 = vpack.c.b16 %v617, %v616
      %v630 = vpack.c.b16 %v619, %v618
      %v631 = vpack.c.b16 %v621, %v620
      %v632 = vpack.c.b16 %v623, %v622
      %v633 = vpack.c.b16 %v625, %v624
      %642 = vmatpush.bf16.msra.mxu0 %v633
      %643 = vmatpush.bf16.msra.mxu0 %v632
      %644 = vmatpush.bf16.msra.mxu0 %v631
      %645 = vmatpush.bf16.msra.mxu0 %v630
      %646 = vmatpush.bf16.msra.mxu0 %v629
      %647 = vmatpush.bf16.msra.mxu0 %v628
      %648 = vmatpush.bf16.msra.mxu0 %v627
      %649 = vmatpush.bf16.msra.mxu0 %v626
      %650 = vmatmul.bf16.gmra.mxu0 %v562
      %v651 = vpop.f32.mrf.mxu0
      %v652 = vadd.f32 0.0, %v651
      %v653 = vpop.f32.mrf.mxu0
      %v654 = vadd.f32 0.0, %v653
      %655 = vmatmul.bf16.gmra.mxu0 %v563
      %v656 = vpop.f32.mrf.mxu0
      %v657 = vadd.f32 0.0, %v656
      %v658 = vpop.f32.mrf.mxu0
      %v659 = vadd.f32 0.0, %v658
      %660 = vmatmul.bf16.gmra.mxu0 %v564
      %v661 = vpop.f32.mrf.mxu0
      %v662 = vadd.f32 0.0, %v661
      %v663 = vpop.f32.mrf.mxu0
      %v664 = vadd.f32 0.0, %v663
      %665 = vmatmul.bf16.gmra.mxu0 %v565
      %v666 = vpop.f32.mrf.mxu0
      %v667 = vadd.f32 0.0, %v666
      %v668 = vpop.f32.mrf.mxu0
      %v669 = vadd.f32 0.0, %v668
      %670 = vmatmul.bf16.gmra.mxu0 %v566
      %v671 = vpop.f32.mrf.mxu0
      %v672 = vadd.f32 0.0, %v671
      %v673 = vpop.f32.mrf.mxu0
      %v674 = vadd.f32 0.0, %v673
      %675 = vmatmul.bf16.gmra.mxu0 %v567
      %v676 = vpop.f32.mrf.mxu0
      %v677 = vadd.f32 0.0, %v676
      %v678 = vpop.f32.mrf.mxu0
      %v679 = vadd.f32 0.0, %v678
      %680 = vmatmul.bf16.gmra.mxu0 %v568
      %v681 = vpop.f32.mrf.mxu0
      %v682 = vadd.f32 0.0, %v681
      %v683 = vpop.f32.mrf.mxu0
      %v684 = vadd.f32 0.0, %v683
      %685 = vmatmul.bf16.gmra.mxu0 %v569
      %v686 = vpop.f32.mrf.mxu0
      %v687 = vadd.f32 0.0, %v686
      %v688 = vpop.f32.mrf.mxu0
      %v689 = vadd.f32 0.0, %v688
      %690 = vmatmul.bf16.gmra.mxu0 %v570
      %v691 = vpop.f32.mrf.mxu0
      %v692 = vadd.f32 0.0, %v691
      %v693 = vpop.f32.mrf.mxu0
      %v694 = vadd.f32 0.0, %v693
      %695 = vmatmul.bf16.gmra.mxu0 %v571
      %v696 = vpop.f32.mrf.mxu0
      %v697 = vadd.f32 0.0, %v696
      %v698 = vpop.f32.mrf.mxu0
      %v699 = vadd.f32 0.0, %v698
      %700 = vmatmul.bf16.gmra.mxu0 %v572
      %v701 = vpop.f32.mrf.mxu0
      %v702 = vadd.f32 0.0, %v701
      %v703 = vpop.f32.mrf.mxu0
      %v704 = vadd.f32 0.0, %v703
      %705 = vmatmul.bf16.gmra.mxu0 %v573
      %v706 = vpop.f32.mrf.mxu0
      %v707 = vadd.f32 0.0, %v706
      %v708 = vpop.f32.mrf.mxu0
      %v709 = vadd.f32 0.0, %v708
      %710 = vmatmul.bf16.gmra.mxu0 %v574
      %v711 = vpop.f32.mrf.mxu0
      %v712 = vadd.f32 0.0, %v711
      %v713 = vpop.f32.mrf.mxu0
      %v714 = vadd.f32 0.0, %v713
      %715 = vmatmul.bf16.gmra.mxu0 %v575
      %v716 = vpop.f32.mrf.mxu0
      %v717 = vadd.f32 0.0, %v716
      %v718 = vpop.f32.mrf.mxu0
      %v719 = vadd.f32 0.0, %v718
      %720 = vmatmul.bf16.gmra.mxu0 %v576
      %v721 = vpop.f32.mrf.mxu0
      %v722 = vadd.f32 0.0, %v721
      %v723 = vpop.f32.mrf.mxu0
      %v724 = vadd.f32 0.0, %v723
      %725 = vmatmul.bf16.gmra.mxu0 %v577
      %v726 = vpop.f32.mrf.mxu0
      %v727 = vadd.f32 0.0, %v726
      %v728 = vpop.f32.mrf.mxu0
      %v729 = vadd.f32 0.0, %v728
      %730 = vdwg.mxu0
      %v731 = vld [vmem:[%s459] sm:$0x1]
      %v733 = vperm.slane %v731, 0
      %v735 = vmul.f32 %v652, %v733
      %v736 = vmul.f32 %v654, %v733
      %v737 = vmul.f32 %v657, %v733
      %v738 = vmul.f32 %v659, %v733
      %v739 = vmul.f32 %v662, %v733
      %v740 = vmul.f32 %v664, %v733
      %v741 = vmul.f32 %v667, %v733
      %v742 = vmul.f32 %v669, %v733
      %v743 = vmul.f32 %v672, %v733
      %v744 = vmul.f32 %v674, %v733
      %v745 = vmul.f32 %v677, %v733
      %v746 = vmul.f32 %v679, %v733
      %v747 = vmul.f32 %v682, %v733
      %v748 = vmul.f32 %v684, %v733
      %v749 = vmul.f32 %v687, %v733
      %v750 = vmul.f32 %v689, %v733
      %v751 = vmul.f32 %v692, %v733
      %v752 = vmul.f32 %v694, %v733
      %v753 = vmul.f32 %v697, %v733
      %v754 = vmul.f32 %v699, %v733
      %v755 = vmul.f32 %v702, %v733
      %v756 = vmul.f32 %v704, %v733
      %v757 = vmul.f32 %v707, %v733
      %v758 = vmul.f32 %v709, %v733
      %v759 = vmul.f32 %v712, %v733
      %v760 = vmul.f32 %v714, %v733
      %v761 = vmul.f32 %v717, %v733
      %v762 = vmul.f32 %v719, %v733
      %v763 = vmul.f32 %v722, %v733
      %v764 = vmul.f32 %v724, %v733
      %v765 = vmul.f32 %v727, %v733
      %v766 = vmul.f32 %v729, %v733
      %v767 = vld [vmem:[%s462] sm:$0x1]
      %v769 = vperm.slane %v767, 0
      %v771 = vadd.f32 %v735, %v769
      %v772 = vadd.f32 %v736, %v769
      %v773 = vadd.f32 %v737, %v769
      %v774 = vadd.f32 %v738, %v769
      %v775 = vadd.f32 %v739, %v769
      %v776 = vadd.f32 %v740, %v769
      %v777 = vadd.f32 %v741, %v769
      %v778 = vadd.f32 %v742, %v769
      %v779 = vadd.f32 %v743, %v769
      %v780 = vadd.f32 %v744, %v769
      %v781 = vadd.f32 %v745, %v769
      %v782 = vadd.f32 %v746, %v769
      %v783 = vadd.f32 %v747, %v769
      %v784 = vadd.f32 %v748, %v769
      %v785 = vadd.f32 %v749, %v769
      %v786 = vadd.f32 %v750, %v769
      %v787 = vadd.f32 %v751, %v769
      %v788 = vadd.f32 %v752, %v769
      %v789 = vadd.f32 %v753, %v769
      %v790 = vadd.f32 %v754, %v769
      %v791 = vadd.f32 %v755, %v769
      %v792 = vadd.f32 %v756, %v769
      %v793 = vadd.f32 %v757, %v769
      %v794 = vadd.f32 %v758, %v769
      %v795 = vadd.f32 %v759, %v769
      %v796 = vadd.f32 %v760, %v769
      %v797 = vadd.f32 %v761, %v769
      %v798 = vadd.f32 %v762, %v769
      %v799 = vadd.f32 %v763, %v769
      %v800 = vadd.f32 %v764, %v769
      %v801 = vadd.f32 %v765, %v769
      %v802 = vadd.f32 %v766, %v769
      %v803 = vmax.f32 %v771, 0.0
      %v804 = vmax.f32 %v772, 0.0
      %v805 = vmax.f32 %v773, 0.0
      %v806 = vmax.f32 %v774, 0.0
      %v807 = vmax.f32 %v775, 0.0
      %v808 = vmax.f32 %v776, 0.0
      %v809 = vmax.f32 %v777, 0.0
      %v810 = vmax.f32 %v778, 0.0
      %v811 = vmax.f32 %v779, 0.0
      %v812 = vmax.f32 %v780, 0.0
      %v813 = vmax.f32 %v781, 0.0
      %v814 = vmax.f32 %v782, 0.0
      %v815 = vmax.f32 %v783, 0.0
      %v816 = vmax.f32 %v784, 0.0
      %v817 = vmax.f32 %v785, 0.0
      %v818 = vmax.f32 %v786, 0.0
      %v819 = vmax.f32 %v787, 0.0
      %v820 = vmax.f32 %v788, 0.0
      %v821 = vmax.f32 %v789, 0.0
      %v822 = vmax.f32 %v790, 0.0
      %v823 = vmax.f32 %v791, 0.0
      %v824 = vmax.f32 %v792, 0.0
      %v825 = vmax.f32 %v793, 0.0
      %v826 = vmax.f32 %v794, 0.0
      %v827 = vmax.f32 %v795, 0.0
      %v828 = vmax.f32 %v796, 0.0
      %v829 = vmax.f32 %v797, 0.0
      %v830 = vmax.f32 %v798, 0.0
      %v831 = vmax.f32 %v799, 0.0
      %v832 = vmax.f32 %v800, 0.0
      %v833 = vmax.f32 %v801, 0.0
      %v834 = vmax.f32 %v802, 0.0
      %v835 = vmin.f32 %v803, 6.0
      %v836 = vmin.f32 %v804, 6.0
      %v837 = vmin.f32 %v805, 6.0
      %v838 = vmin.f32 %v806, 6.0
      %v839 = vmin.f32 %v807, 6.0
      %v840 = vmin.f32 %v808, 6.0
      %v841 = vmin.f32 %v809, 6.0
      %v842 = vmin.f32 %v810, 6.0
      %v843 = vmin.f32 %v811, 6.0
      %v844 = vmin.f32 %v812, 6.0
      %v845 = vmin.f32 %v813, 6.0
      %v846 = vmin.f32 %v814, 6.0
      %v847 = vmin.f32 %v815, 6.0
      %v848 = vmin.f32 %v816, 6.0
      %v849 = vmin.f32 %v817, 6.0
      %v850 = vmin.f32 %v818, 6.0
      %v851 = vmin.f32 %v819, 6.0
      %v852 = vmin.f32 %v820, 6.0
      %v853 = vmin.f32 %v821, 6.0
      %v854 = vmin.f32 %v822, 6.0
      %v855 = vmin.f32 %v823, 6.0
      %v856 = vmin.f32 %v824, 6.0
      %v857 = vmin.f32 %v825, 6.0
      %v858 = vmin.f32 %v826, 6.0
      %v859 = vmin.f32 %v827, 6.0
      %v860 = vmin.f32 %v828, 6.0
      %v861 = vmin.f32 %v829, 6.0
      %v862 = vmin.f32 %v830, 6.0
      %v863 = vmin.f32 %v831, 6.0
      %v864 = vmin.f32 %v832, 6.0
      %v865 = vmin.f32 %v833, 6.0
      %v866 = vmin.f32 %v834, 6.0
      %s867 = scalar_lea.vmem [#allocation2], 32
      %868 = vst [vmem:[%s867 + $0x8] sm:$0xff] %v835
      %869 = vst [vmem:[%s867 + $0x10] sm:$0xff] %v836
      %870 = vst [vmem:[%s867 + $0x28] sm:$0xff] %v837
      %871 = vst [vmem:[%s867 + $0x30] sm:$0xff] %v838
      %872 = vst [vmem:[%s867 + $0x48] sm:$0xff] %v839
      %873 = vst [vmem:[%s867 + $0x50] sm:$0xff] %v840
      %874 = vst [vmem:[%s867 + $0x68] sm:$0xff] %v841
      %875 = vst [vmem:[%s867 + $0x70] sm:$0xff] %v842
      %876 = vst [vmem:[%s867 + $0x88] sm:$0xff] %v843
      %877 = vst [vmem:[%s867 + $0x90] sm:$0xff] %v844
      %878 = vst [vmem:[%s867 + $0xa8] sm:$0xff] %v845
      %879 = vst [vmem:[%s867 + $0xb0] sm:$0xff] %v846
      %880 = vst [vmem:[%s867 + $0xc8] sm:$0xff] %v847
      %881 = vst [vmem:[%s867 + $0xd0] sm:$0xff] %v848
      %882 = vst [vmem:[%s867 + $0xe8] sm:$0xff] %v849
      %883 = vst [vmem:[%s867 + $0xf0] sm:$0xff] %v850
      %884 = vst [vmem:[%s867 + $0x108] sm:$0xff] %v851
      %885 = vst [vmem:[%s867 + $0x110] sm:$0xff] %v852
      %886 = vst [vmem:[%s867 + $0x128] sm:$0xff] %v853
      %887 = vst [vmem:[%s867 + $0x130] sm:$0xff] %v854
      %888 = vst [vmem:[%s867 + $0x148] sm:$0xff] %v855
      %889 = vst [vmem:[%s867 + $0x150] sm:$0xff] %v856
      %890 = vst [vmem:[%s867 + $0x168] sm:$0xff] %v857
      %891 = vst [vmem:[%s867 + $0x170] sm:$0xff] %v858
      %892 = vst [vmem:[%s867 + $0x188] sm:$0xff] %v859
      %893 = vst [vmem:[%s867 + $0x190] sm:$0xff] %v860
      %894 = vst [vmem:[%s867 + $0x1a8] sm:$0xff] %v861
      %895 = vst [vmem:[%s867 + $0x1b0] sm:$0xff] %v862
      %896 = vst [vmem:[%s867 + $0x1c8] sm:$0xff] %v863
      %897 = vst [vmem:[%s867 + $0x1d0] sm:$0xff] %v864
      %898 = vst [vmem:[%s867 + $0x1e8] sm:$0xff] %v865
      %899 = vst [vmem:[%s867 + $0x1f0] sm:$0xff] %v866
      %v900 = vld [vmem:[%s466] sm:$0x7]
      %v901 = vld [vmem:[%s466 + $0x4] sm:$0x7]
      %v902 = vld [vmem:[%s466 + $0x8] sm:$0x7]
      %v903 = vld [vmem:[%s469] sm:$0x1]
      %v904 = vld [vmem:[%s472] sm:$0x1]
      %v905 = vld [vmem:[#allocation2 + $0x7] sm:$0xff]
      %v906 = vld [vmem:[#allocation2 + $0xf] sm:$0xff]
      %v907 = vld [vmem:[#allocation2 + $0x27] sm:$0xff]
      %v908 = vld [vmem:[#allocation2 + $0x2f] sm:$0xff]
      %v909 = vld [vmem:[#allocation2 + $0x47] sm:$0xff]
      %v910 = vld [vmem:[#allocation2 + $0x4f] sm:$0xff]
      %v911 = vld [vmem:[#allocation2 + $0x67] sm:$0xff]
      %v912 = vld [vmem:[#allocation2 + $0x6f] sm:$0xff]
      %v913 = vld [vmem:[#allocation2 + $0x87] sm:$0xff]
      %v914 = vld [vmem:[#allocation2 + $0x8f] sm:$0xff]
      %v915 = vld [vmem:[#allocation2 + $0xa7] sm:$0xff]
      %v916 = vld [vmem:[#allocation2 + $0xaf] sm:$0xff]
      %v917 = vld [vmem:[#allocation2 + $0xc7] sm:$0xff]
      %v918 = vld [vmem:[#allocation2 + $0xcf] sm:$0xff]
      %v919 = vld [vmem:[#allocation2 + $0xe7] sm:$0xff]
      %v920 = vld [vmem:[#allocation2 + $0xef] sm:$0xff]
      %v921 = vld [vmem:[#allocation2 + $0x107] sm:$0xff]
      %v922 = vld [vmem:[#allocation2 + $0x10f] sm:$0xff]
      %v923 = vld [vmem:[#allocation2 + $0x127] sm:$0xff]
      %v924 = vld [vmem:[#allocation2 + $0x12f] sm:$0xff]
      %v925 = vld [vmem:[#allocation2 + $0x147] sm:$0xff]
      %v926 = vld [vmem:[#allocation2 + $0x14f] sm:$0xff]
      %v927 = vld [vmem:[#allocation2 + $0x167] sm:$0xff]
      %v928 = vld [vmem:[#allocation2 + $0x16f] sm:$0xff]
      %v929 = vld [vmem:[#allocation2 + $0x187] sm:$0xff]
      %v930 = vld [vmem:[#allocation2 + $0x18f] sm:$0xff]
      %v931 = vld [vmem:[#allocation2 + $0x1a7] sm:$0xff]
      %v932 = vld [vmem:[#allocation2 + $0x1af] sm:$0xff]
      %v933 = vld [vmem:[#allocation2 + $0x1c7] sm:$0xff]
      %v934 = vld [vmem:[#allocation2 + $0x1cf] sm:$0xff]
      %v935 = vld [vmem:[#allocation2 + $0x1e7] sm:$0xff]
      %v936 = vld [vmem:[#allocation2 + $0x1ef] sm:$0xff]
      %v937 = vperm.slane %v900, 0
      %v938 = vmul.f32 %v905, %v937
      %v939 = vmul.f32 %v906, %v937
      %v940 = vmul.f32 %v907, %v937
      %v941 = vmul.f32 %v908, %v937
      %v942 = vmul.f32 %v909, %v937
      %v943 = vmul.f32 %v910, %v937
      %v944 = vmul.f32 %v911, %v937
      %v945 = vmul.f32 %v912, %v937
      %v946 = vmul.f32 %v913, %v937
      %v947 = vmul.f32 %v914, %v937
      %v948 = vmul.f32 %v915, %v937
      %v949 = vmul.f32 %v916, %v937
      %v950 = vmul.f32 %v917, %v937
      %v951 = vmul.f32 %v918, %v937
      %v952 = vmul.f32 %v919, %v937
      %v953 = vmul.f32 %v920, %v937
      %v954 = vmul.f32 %v921, %v937
      %v955 = vmul.f32 %v922, %v937
      %v956 = vmul.f32 %v923, %v937
      %v957 = vmul.f32 %v924, %v937
      %v958 = vmul.f32 %v925, %v937
      %v959 = vmul.f32 %v926, %v937
      %v960 = vmul.f32 %v927, %v937
      %v961 = vmul.f32 %v928, %v937
      %v962 = vmul.f32 %v929, %v937
      %v963 = vmul.f32 %v930, %v937
      %v964 = vmul.f32 %v931, %v937
      %v965 = vmul.f32 %v932, %v937
      %v966 = vmul.f32 %v933, %v937
      %v967 = vmul.f32 %v934, %v937
      %v968 = vmul.f32 %v935, %v937
      %v969 = vmul.f32 %v936, %v937
      %v970 = vld [vmem:[#allocation2 + $0x8] sm:$0xff]
      %v971 = vld [vmem:[#allocation2 + $0x10] sm:$0xff]
      %v972 = vld [vmem:[#allocation2 + $0x28] sm:$0xff]
      %v973 = vld [vmem:[#allocation2 + $0x30] sm:$0xff]
      %v974 = vld [vmem:[#allocation2 + $0x48] sm:$0xff]
      %v975 = vld [vmem:[#allocation2 + $0x50] sm:$0xff]
      %v976 = vld [vmem:[#allocation2 + $0x68] sm:$0xff]
      %v977 = vld [vmem:[#allocation2 + $0x70] sm:$0xff]
      %v978 = vld [vmem:[#allocation2 + $0x88] sm:$0xff]
      %v979 = vld [vmem:[#allocation2 + $0x90] sm:$0xff]
      %v980 = vld [vmem:[#allocation2 + $0xa8] sm:$0xff]
      %v981 = vld [vmem:[#allocation2 + $0xb0] sm:$0xff]
      %v982 = vld [vmem:[#allocation2 + $0xc8] sm:$0xff]
      %v983 = vld [vmem:[#allocation2 + $0xd0] sm:$0xff]
      %v984 = vld [vmem:[#allocation2 + $0xe8] sm:$0xff]
      %v985 = vld [vmem:[#allocation2 + $0xf0] sm:$0xff]
      %v986 = vld [vmem:[#allocation2 + $0x108] sm:$0xff]
      %v987 = vld [vmem:[#allocation2 + $0x110] sm:$0xff]
      %v988 = vld [vmem:[#allocation2 + $0x128] sm:$0xff]
      %v989 = vld [vmem:[#allocation2 + $0x130] sm:$0xff]
      %v990 = vld [vmem:[#allocation2 + $0x148] sm:$0xff]
      %v991 = vld [vmem:[#allocation2 + $0x150] sm:$0xff]
      %v992 = vld [vmem:[#allocation2 + $0x168] sm:$0xff]
      %v993 = vld [vmem:[#allocation2 + $0x170] sm:$0xff]
      %v994 = vld [vmem:[#allocation2 + $0x188] sm:$0xff]
      %v995 = vld [vmem:[#allocation2 + $0x190] sm:$0xff]
      %v996 = vld [vmem:[#allocation2 + $0x1a8] sm:$0xff]
      %v997 = vld [vmem:[#allocation2 + $0x1b0] sm:$0xff]
      %v998 = vld [vmem:[#allocation2 + $0x1c8] sm:$0xff]
      %v999 = vld [vmem:[#allocation2 + $0x1d0] sm:$0xff]
      %v1000 = vld [vmem:[#allocation2 + $0x1e8] sm:$0xff]
      %v1001 = vld [vmem:[#allocation2 + $0x1f0] sm:$0xff]
      %v1002 = vperm.slane %v900, 1
      %v1003 = vmul.f32 %v970, %v1002
      %v1004 = vmul.f32 %v971, %v1002
      %v1005 = vmul.f32 %v972, %v1002
      %v1006 = vmul.f32 %v973, %v1002
      %v1007 = vmul.f32 %v974, %v1002
      %v1008 = vmul.f32 %v975, %v1002
      %v1009 = vmul.f32 %v976, %v1002
      %v1010 = vmul.f32 %v977, %v1002
      %v1011 = vmul.f32 %v978, %v1002
      %v1012 = vmul.f32 %v979, %v1002
      %v1013 = vmul.f32 %v980, %v1002
      %v1014 = vmul.f32 %v981, %v1002
      %v1015 = vmul.f32 %v982, %v1002
      %v1016 = vmul.f32 %v983, %v1002
      %v1017 = vmul.f32 %v984, %v1002
      %v1018 = vmul.f32 %v985, %v1002
      %v1019 = vmul.f32 %v986, %v1002
      %v1020 = vmul.f32 %v987, %v1002
      %v1021 = vmul.f32 %v988, %v1002
      %v1022 = vmul.f32 %v989, %v1002
      %v1023 = vmul.f32 %v990, %v1002
      %v1024 = vmul.f32 %v991, %v1002
      %v1025 = vmul.f32 %v992, %v1002
      %v1026 = vmul.f32 %v993, %v1002
      %v1027 = vmul.f32 %v994, %v1002
      %v1028 = vmul.f32 %v995, %v1002
      %v1029 = vmul.f32 %v996, %v1002
      %v1030 = vmul.f32 %v997, %v1002
      %v1031 = vmul.f32 %v998, %v1002
      %v1032 = vmul.f32 %v999, %v1002
      %v1033 = vmul.f32 %v1000, %v1002
      %v1034 = vmul.f32 %v1001, %v1002
      %v1035 = vadd.f32 %v938, %v1003
      %v1036 = vadd.f32 %v939, %v1004
      %v1037 = vadd.f32 %v940, %v1005
      %v1038 = vadd.f32 %v941, %v1006
      %v1039 = vadd.f32 %v942, %v1007
      %v1040 = vadd.f32 %v943, %v1008
      %v1041 = vadd.f32 %v944, %v1009
      %v1042 = vadd.f32 %v945, %v1010
      %v1043 = vadd.f32 %v946, %v1011
      %v1044 = vadd.f32 %v947, %v1012
      %v1045 = vadd.f32 %v948, %v1013
      %v1046 = vadd.f32 %v949, %v1014
      %v1047 = vadd.f32 %v950, %v1015
      %v1048 = vadd.f32 %v951, %v1016
      %v1049 = vadd.f32 %v952, %v1017
      %v1050 = vadd.f32 %v953, %v1018
      %v1051 = vadd.f32 %v954, %v1019
      %v1052 = vadd.f32 %v955, %v1020
      %v1053 = vadd.f32 %v956, %v1021
      %v1054 = vadd.f32 %v957, %v1022
      %v1055 = vadd.f32 %v958, %v1023
      %v1056 = vadd.f32 %v959, %v1024
      %v1057 = vadd.f32 %v960, %v1025
      %v1058 = vadd.f32 %v961, %v1026
      %v1059 = vadd.f32 %v962, %v1027
      %v1060 = vadd.f32 %v963, %v1028
      %v1061 = vadd.f32 %v964, %v1029
      %v1062 = vadd.f32 %v965, %v1030
      %v1063 = vadd.f32 %v966, %v1031
      %v1064 = vadd.f32 %v967, %v1032
      %v1065 = vadd.f32 %v968, %v1033
      %v1066 = vadd.f32 %v969, %v1034
      %v1067 = vld [vmem:[#allocation2 + $0x9] sm:$0xff]
      %v1068 = vld [vmem:[#allocation2 + $0x11] sm:$0xff]
      %v1069 = vld [vmem:[#allocation2 + $0x29] sm:$0xff]
      %v1070 = vld [vmem:[#allocation2 + $0x31] sm:$0xff]
      %v1071 = vld [vmem:[#allocation2 + $0x49] sm:$0xff]
      %v1072 = vld [vmem:[#allocation2 + $0x51] sm:$0xff]
      %v1073 = vld [vmem:[#allocation2 + $0x69] sm:$0xff]
      %v1074 = vld [vmem:[#allocation2 + $0x71] sm:$0xff]
      %v1075 = vld [vmem:[#allocation2 + $0x89] sm:$0xff]
      %v1076 = vld [vmem:[#allocation2 + $0x91] sm:$0xff]
      %v1077 = vld [vmem:[#allocation2 + $0xa9] sm:$0xff]
      %v1078 = vld [vmem:[#allocation2 + $0xb1] sm:$0xff]
      %v1079 = vld [vmem:[#allocation2 + $0xc9] sm:$0xff]
      %v1080 = vld [vmem:[#allocation2 + $0xd1] sm:$0xff]
      %v1081 = vld [vmem:[#allocation2 + $0xe9] sm:$0xff]
      %v1082 = vld [vmem:[#allocation2 + $0xf1] sm:$0xff]
      %v1083 = vld [vmem:[#allocation2 + $0x109] sm:$0xff]
      %v1084 = vld [vmem:[#allocation2 + $0x111] sm:$0xff]
      %v1085 = vld [vmem:[#allocation2 + $0x129] sm:$0xff]
      %v1086 = vld [vmem:[#allocation2 + $0x131] sm:$0xff]
      %v1087 = vld [vmem:[#allocation2 + $0x149] sm:$0xff]
      %v1088 = vld [vmem:[#allocation2 + $0x151] sm:$0xff]
      %v1089 = vld [vmem:[#allocation2 + $0x169] sm:$0xff]
      %v1090 = vld [vmem:[#allocation2 + $0x171] sm:$0xff]
      %v1091 = vld [vmem:[#allocation2 + $0x189] sm:$0xff]
      %v1092 = vld [vmem:[#allocation2 + $0x191] sm:$0xff]
      %v1093 = vld [vmem:[#allocation2 + $0x1a9] sm:$0xff]
      %v1094 = vld [vmem:[#allocation2 + $0x1b1] sm:$0xff]
      %v1095 = vld [vmem:[#allocation2 + $0x1c9] sm:$0xff]
      %v1096 = vld [vmem:[#allocation2 + $0x1d1] sm:$0xff]
      %v1097 = vld [vmem:[#allocation2 + $0x1e9] sm:$0xff]
      %v1098 = vld [vmem:[#allocation2 + $0x1f1] sm:$0xff]
      %v1099 = vperm.slane %v900, 2
      %v1100 = vmul.f32 %v1067, %v1099
      %v1101 = vmul.f32 %v1068, %v1099
      %v1102 = vmul.f32 %v1069, %v1099
      %v1103 = vmul.f32 %v1070, %v1099
      %v1104 = vmul.f32 %v1071, %v1099
      %v1105 = vmul.f32 %v1072, %v1099
      %v1106 = vmul.f32 %v1073, %v1099
      %v1107 = vmul.f32 %v1074, %v1099
      %v1108 = vmul.f32 %v1075, %v1099
      %v1109 = vmul.f32 %v1076, %v1099
      %v1110 = vmul.f32 %v1077, %v1099
      %v1111 = vmul.f32 %v1078, %v1099
      %v1112 = vmul.f32 %v1079, %v1099
      %v1113 = vmul.f32 %v1080, %v1099
      %v1114 = vmul.f32 %v1081, %v1099
      %v1115 = vmul.f32 %v1082, %v1099
      %v1116 = vmul.f32 %v1083, %v1099
      %v1117 = vmul.f32 %v1084, %v1099
      %v1118 = vmul.f32 %v1085, %v1099
      %v1119 = vmul.f32 %v1086, %v1099
      %v1120 = vmul.f32 %v1087, %v1099
      %v1121 = vmul.f32 %v1088, %v1099
      %v1122 = vmul.f32 %v1089, %v1099
      %v1123 = vmul.f32 %v1090, %v1099
      %v1124 = vmul.f32 %v1091, %v1099
      %v1125 = vmul.f32 %v1092, %v1099
      %v1126 = vmul.f32 %v1093, %v1099
      %v1127 = vmul.f32 %v1094, %v1099
      %v1128 = vmul.f32 %v1095, %v1099
      %v1129 = vmul.f32 %v1096, %v1099
      %v1130 = vmul.f32 %v1097, %v1099
      %v1131 = vmul.f32 %v1098, %v1099
      %v1132 = vadd.f32 %v1035, %v1100
      %v1133 = vadd.f32 %v1036, %v1101
      %v1134 = vadd.f32 %v1037, %v1102
      %v1135 = vadd.f32 %v1038, %v1103
      %v1136 = vadd.f32 %v1039, %v1104
      %v1137 = vadd.f32 %v1040, %v1105
      %v1138 = vadd.f32 %v1041, %v1106
      %v1139 = vadd.f32 %v1042, %v1107
      %v1140 = vadd.f32 %v1043, %v1108
      %v1141 = vadd.f32 %v1044, %v1109
      %v1142 = vadd.f32 %v1045, %v1110
      %v1143 = vadd.f32 %v1046, %v1111
      %v1144 = vadd.f32 %v1047, %v1112
      %v1145 = vadd.f32 %v1048, %v1113
      %v1146 = vadd.f32 %v1049, %v1114
      %v1147 = vadd.f32 %v1050, %v1115
      %v1148 = vadd.f32 %v1051, %v1116
      %v1149 = vadd.f32 %v1052, %v1117
      %v1150 = vadd.f32 %v1053, %v1118
      %v1151 = vadd.f32 %v1054, %v1119
      %v1152 = vadd.f32 %v1055, %v1120
      %v1153 = vadd.f32 %v1056, %v1121
      %v1154 = vadd.f32 %v1057, %v1122
      %v1155 = vadd.f32 %v1058, %v1123
      %v1156 = vadd.f32 %v1059, %v1124
      %v1157 = vadd.f32 %v1060, %v1125
      %v1158 = vadd.f32 %v1061, %v1126
      %v1159 = vadd.f32 %v1062, %v1127
      %v1160 = vadd.f32 %v1063, %v1128
      %v1161 = vadd.f32 %v1064, %v1129
      %v1162 = vadd.f32 %v1065, %v1130
      %v1163 = vadd.f32 %v1066, %v1131
      %v1164 = vld [vmem:[%s867 + $0x7] sm:$0xff]
      %v1165 = vld [vmem:[%s867 + $0xf] sm:$0xff]
      %v1166 = vld [vmem:[%s867 + $0x27] sm:$0xff]
      %v1167 = vld [vmem:[%s867 + $0x2f] sm:$0xff]
      %v1168 = vld [vmem:[%s867 + $0x47] sm:$0xff]
      %v1169 = vld [vmem:[%s867 + $0x4f] sm:$0xff]
      %v1170 = vld [vmem:[%s867 + $0x67] sm:$0xff]
      %v1171 = vld [vmem:[%s867 + $0x6f] sm:$0xff]
      %v1172 = vld [vmem:[%s867 + $0x87] sm:$0xff]
      %v1173 = vld [vmem:[%s867 + $0x8f] sm:$0xff]
      %v1174 = vld [vmem:[%s867 + $0xa7] sm:$0xff]
      %v1175 = vld [vmem:[%s867 + $0xaf] sm:$0xff]
      %v1176 = vld [vmem:[%s867 + $0xc7] sm:$0xff]
      %v1177 = vld [vmem:[%s867 + $0xcf] sm:$0xff]
      %v1178 = vld [vmem:[%s867 + $0xe7] sm:$0xff]
      %v1179 = vld [vmem:[%s867 + $0xef] sm:$0xff]
      %v1180 = vld [vmem:[%s867 + $0x107] sm:$0xff]
      %v1181 = vld [vmem:[%s867 + $0x10f] sm:$0xff]
      %v1182 = vld [vmem:[%s867 + $0x127] sm:$0xff]
      %v1183 = vld [vmem:[%s867 + $0x12f] sm:$0xff]
      %v1184 = vld [vmem:[%s867 + $0x147] sm:$0xff]
      %v1185 = vld [vmem:[%s867 + $0x14f] sm:$0xff]
      %v1186 = vld [vmem:[%s867 + $0x167] sm:$0xff]
      %v1187 = vld [vmem:[%s867 + $0x16f] sm:$0xff]
      %v1188 = vld [vmem:[%s867 + $0x187] sm:$0xff]
      %v1189 = vld [vmem:[%s867 + $0x18f] sm:$0xff]
      %v1190 = vld [vmem:[%s867 + $0x1a7] sm:$0xff]
      %v1191 = vld [vmem:[%s867 + $0x1af] sm:$0xff]
      %v1192 = vld [vmem:[%s867 + $0x1c7] sm:$0xff]
      %v1193 = vld [vmem:[%s867 + $0x1cf] sm:$0xff]
      %v1194 = vld [vmem:[%s867 + $0x1e7] sm:$0xff]
      %v1195 = vld [vmem:[%s867 + $0x1ef] sm:$0xff]
      %v1196 = vperm.slane %v901, 0
      %v1197 = vmul.f32 %v1164, %v1196
      %v1198 = vmul.f32 %v1165, %v1196
      %v1199 = vmul.f32 %v1166, %v1196
      %v1200 = vmul.f32 %v1167, %v1196
      %v1201 = vmul.f32 %v1168, %v1196
      %v1202 = vmul.f32 %v1169, %v1196
      %v1203 = vmul.f32 %v1170, %v1196
      %v1204 = vmul.f32 %v1171, %v1196
      %v1205 = vmul.f32 %v1172, %v1196
      %v1206 = vmul.f32 %v1173, %v1196
      %v1207 = vmul.f32 %v1174, %v1196
      %v1208 = vmul.f32 %v1175, %v1196
      %v1209 = vmul.f32 %v1176, %v1196
      %v1210 = vmul.f32 %v1177, %v1196
      %v1211 = vmul.f32 %v1178, %v1196
      %v1212 = vmul.f32 %v1179, %v1196
      %v1213 = vmul.f32 %v1180, %v1196
      %v1214 = vmul.f32 %v1181, %v1196
      %v1215 = vmul.f32 %v1182, %v1196
      %v1216 = vmul.f32 %v1183, %v1196
      %v1217 = vmul.f32 %v1184, %v1196
      %v1218 = vmul.f32 %v1185, %v1196
      %v1219 = vmul.f32 %v1186, %v1196
      %v1220 = vmul.f32 %v1187, %v1196
      %v1221 = vmul.f32 %v1188, %v1196
      %v1222 = vmul.f32 %v1189, %v1196
      %v1223 = vmul.f32 %v1190, %v1196
      %v1224 = vmul.f32 %v1191, %v1196
      %v1225 = vmul.f32 %v1192, %v1196
      %v1226 = vmul.f32 %v1193, %v1196
      %v1227 = vmul.f32 %v1194, %v1196
      %v1228 = vmul.f32 %v1195, %v1196
      %v1229 = vadd.f32 %v1132, %v1197
      %v1230 = vadd.f32 %v1133, %v1198
      %v1231 = vadd.f32 %v1134, %v1199
      %v1232 = vadd.f32 %v1135, %v1200
      %v1233 = vadd.f32 %v1136, %v1201
      %v1234 = vadd.f32 %v1137, %v1202
      %v1235 = vadd.f32 %v1138, %v1203
      %v1236 = vadd.f32 %v1139, %v1204
      %v1237 = vadd.f32 %v1140, %v1205
      %v1238 = vadd.f32 %v1141, %v1206
      %v1239 = vadd.f32 %v1142, %v1207
      %v1240 = vadd.f32 %v1143, %v1208
      %v1241 = vadd.f32 %v1144, %v1209
      %v1242 = vadd.f32 %v1145, %v1210
      %v1243 = vadd.f32 %v1146, %v1211
      %v1244 = vadd.f32 %v1147, %v1212
      %v1245 = vadd.f32 %v1148, %v1213
      %v1246 = vadd.f32 %v1149, %v1214
      %v1247 = vadd.f32 %v1150, %v1215
      %v1248 = vadd.f32 %v1151, %v1216
      %v1249 = vadd.f32 %v1152, %v1217
      %v1250 = vadd.f32 %v1153, %v1218
      %v1251 = vadd.f32 %v1154, %v1219
      %v1252 = vadd.f32 %v1155, %v1220
      %v1253 = vadd.f32 %v1156, %v1221
      %v1254 = vadd.f32 %v1157, %v1222
      %v1255 = vadd.f32 %v1158, %v1223
      %v1256 = vadd.f32 %v1159, %v1224
      %v1257 = vadd.f32 %v1160, %v1225
      %v1258 = vadd.f32 %v1161, %v1226
      %v1259 = vadd.f32 %v1162, %v1227
      %v1260 = vadd.f32 %v1163, %v1228
      %v1261 = vld [vmem:[%s867 + $0x8] sm:$0xff]
      %v1262 = vld [vmem:[%s867 + $0x10] sm:$0xff]
      %v1263 = vld [vmem:[%s867 + $0x28] sm:$0xff]
      %v1264 = vld [vmem:[%s867 + $0x30] sm:$0xff]
      %v1265 = vld [vmem:[%s867 + $0x48] sm:$0xff]
      %v1266 = vld [vmem:[%s867 + $0x50] sm:$0xff]
      %v1267 = vld [vmem:[%s867 + $0x68] sm:$0xff]
      %v1268 = vld [vmem:[%s867 + $0x70] sm:$0xff]
      %v1269 = vld [vmem:[%s867 + $0x88] sm:$0xff]
      %v1270 = vld [vmem:[%s867 + $0x90] sm:$0xff]
      %v1271 = vld [vmem:[%s867 + $0xa8] sm:$0xff]
      %v1272 = vld [vmem:[%s867 + $0xb0] sm:$0xff]
      %v1273 = vld [vmem:[%s867 + $0xc8] sm:$0xff]
      %v1274 = vld [vmem:[%s867 + $0xd0] sm:$0xff]
      %v1275 = vld [vmem:[%s867 + $0xe8] sm:$0xff]
      %v1276 = vld [vmem:[%s867 + $0xf0] sm:$0xff]
      %v1277 = vld [vmem:[%s867 + $0x108] sm:$0xff]
      %v1278 = vld [vmem:[%s867 + $0x110] sm:$0xff]
      %v1279 = vld [vmem:[%s867 + $0x128] sm:$0xff]
      %v1280 = vld [vmem:[%s867 + $0x130] sm:$0xff]
      %v1281 = vld [vmem:[%s867 + $0x148] sm:$0xff]
      %v1282 = vld [vmem:[%s867 + $0x150] sm:$0xff]
      %v1283 = vld [vmem:[%s867 + $0x168] sm:$0xff]
      %v1284 = vld [vmem:[%s867 + $0x170] sm:$0xff]
      %v1285 = vld [vmem:[%s867 + $0x188] sm:$0xff]
      %v1286 = vld [vmem:[%s867 + $0x190] sm:$0xff]
      %v1287 = vld [vmem:[%s867 + $0x1a8] sm:$0xff]
      %v1288 = vld [vmem:[%s867 + $0x1b0] sm:$0xff]
      %v1289 = vld [vmem:[%s867 + $0x1c8] sm:$0xff]
      %v1290 = vld [vmem:[%s867 + $0x1d0] sm:$0xff]
      %v1291 = vld [vmem:[%s867 + $0x1e8] sm:$0xff]
      %v1292 = vld [vmem:[%s867 + $0x1f0] sm:$0xff]
      %v1293 = vperm.slane %v901, 1
      %v1294 = vmul.f32 %v1261, %v1293
      %v1295 = vmul.f32 %v1262, %v1293
      %v1296 = vmul.f32 %v1263, %v1293
      %v1297 = vmul.f32 %v1264, %v1293
      %v1298 = vmul.f32 %v1265, %v1293
      %v1299 = vmul.f32 %v1266, %v1293
      %v1300 = vmul.f32 %v1267, %v1293
      %v1301 = vmul.f32 %v1268, %v1293
      %v1302 = vmul.f32 %v1269, %v1293
      %v1303 = vmul.f32 %v1270, %v1293
      %v1304 = vmul.f32 %v1271, %v1293
      %v1305 = vmul.f32 %v1272, %v1293
      %v1306 = vmul.f32 %v1273, %v1293
      %v1307 = vmul.f32 %v1274, %v1293
      %v1308 = vmul.f32 %v1275, %v1293
      %v1309 = vmul.f32 %v1276, %v1293
      %v1310 = vmul.f32 %v1277, %v1293
      %v1311 = vmul.f32 %v1278, %v1293
      %v1312 = vmul.f32 %v1279, %v1293
      %v1313 = vmul.f32 %v1280, %v1293
      %v1314 = vmul.f32 %v1281, %v1293
      %v1315 = vmul.f32 %v1282, %v1293
      %v1316 = vmul.f32 %v1283, %v1293
      %v1317 = vmul.f32 %v1284, %v1293
      %v1318 = vmul.f32 %v1285, %v1293
      %v1319 = vmul.f32 %v1286, %v1293
      %v1320 = vmul.f32 %v1287, %v1293
      %v1321 = vmul.f32 %v1288, %v1293
      %v1322 = vmul.f32 %v1289, %v1293
      %v1323 = vmul.f32 %v1290, %v1293
      %v1324 = vmul.f32 %v1291, %v1293
      %v1325 = vmul.f32 %v1292, %v1293
      %v1326 = vadd.f32 %v1229, %v1294
      %v1327 = vadd.f32 %v1230, %v1295
      %v1328 = vadd.f32 %v1231, %v1296
      %v1329 = vadd.f32 %v1232, %v1297
      %v1330 = vadd.f32 %v1233, %v1298
      %v1331 = vadd.f32 %v1234, %v1299
      %v1332 = vadd.f32 %v1235, %v1300
      %v1333 = vadd.f32 %v1236, %v1301
      %v1334 = vadd.f32 %v1237, %v1302
      %v1335 = vadd.f32 %v1238, %v1303
      %v1336 = vadd.f32 %v1239, %v1304
      %v1337 = vadd.f32 %v1240, %v1305
      %v1338 = vadd.f32 %v1241, %v1306
      %v1339 = vadd.f32 %v1242, %v1307
      %v1340 = vadd.f32 %v1243, %v1308
      %v1341 = vadd.f32 %v1244, %v1309
      %v1342 = vadd.f32 %v1245, %v1310
      %v1343 = vadd.f32 %v1246, %v1311
      %v1344 = vadd.f32 %v1247, %v1312
      %v1345 = vadd.f32 %v1248, %v1313
      %v1346 = vadd.f32 %v1249, %v1314
      %v1347 = vadd.f32 %v1250, %v1315
      %v1348 = vadd.f32 %v1251, %v1316
      %v1349 = vadd.f32 %v1252, %v1317
      %v1350 = vadd.f32 %v1253, %v1318
      %v1351 = vadd.f32 %v1254, %v1319
      %v1352 = vadd.f32 %v1255, %v1320
      %v1353 = vadd.f32 %v1256, %v1321
      %v1354 = vadd.f32 %v1257, %v1322
      %v1355 = vadd.f32 %v1258, %v1323
      %v1356 = vadd.f32 %v1259, %v1324
      %v1357 = vadd.f32 %v1260, %v1325
      %v1358 = vld [vmem:[%s867 + $0x9] sm:$0xff]
      %v1359 = vld [vmem:[%s867 + $0x11] sm:$0xff]
      %v1360 = vld [vmem:[%s867 + $0x29] sm:$0xff]
      %v1361 = vld [vmem:[%s867 + $0x31] sm:$0xff]
      %v1362 = vld [vmem:[%s867 + $0x49] sm:$0xff]
      %v1363 = vld [vmem:[%s867 + $0x51] sm:$0xff]
      %v1364 = vld [vmem:[%s867 + $0x69] sm:$0xff]
      %v1365 = vld [vmem:[%s867 + $0x71] sm:$0xff]
      %v1366 = vld [vmem:[%s867 + $0x89] sm:$0xff]
      %v1367 = vld [vmem:[%s867 + $0x91] sm:$0xff]
      %v1368 = vld [vmem:[%s867 + $0xa9] sm:$0xff]
      %v1369 = vld [vmem:[%s867 + $0xb1] sm:$0xff]
      %v1370 = vld [vmem:[%s867 + $0xc9] sm:$0xff]
      %v1371 = vld [vmem:[%s867 + $0xd1] sm:$0xff]
      %v1372 = vld [vmem:[%s867 + $0xe9] sm:$0xff]
      %v1373 = vld [vmem:[%s867 + $0xf1] sm:$0xff]
      %v1374 = vld [vmem:[%s867 + $0x109] sm:$0xff]
      %v1375 = vld [vmem:[%s867 + $0x111] sm:$0xff]
      %v1376 = vld [vmem:[%s867 + $0x129] sm:$0xff]
      %v1377 = vld [vmem:[%s867 + $0x131] sm:$0xff]
      %v1378 = vld [vmem:[%s867 + $0x149] sm:$0xff]
      %v1379 = vld [vmem:[%s867 + $0x151] sm:$0xff]
      %v1380 = vld [vmem:[%s867 + $0x169] sm:$0xff]
      %v1381 = vld [vmem:[%s867 + $0x171] sm:$0xff]
      %v1382 = vld [vmem:[%s867 + $0x189] sm:$0xff]
      %v1383 = vld [vmem:[%s867 + $0x191] sm:$0xff]
      %v1384 = vld [vmem:[%s867 + $0x1a9] sm:$0xff]
      %v1385 = vld [vmem:[%s867 + $0x1b1] sm:$0xff]
      %v1386 = vld [vmem:[%s867 + $0x1c9] sm:$0xff]
      %v1387 = vld [vmem:[%s867 + $0x1d1] sm:$0xff]
      %v1388 = vld [vmem:[%s867 + $0x1e9] sm:$0xff]
      %v1389 = vld [vmem:[%s867 + $0x1f1] sm:$0xff]
      %v1390 = vperm.slane %v901, 2
      %v1391 = vmul.f32 %v1358, %v1390
      %v1392 = vmul.f32 %v1359, %v1390
      %v1393 = vmul.f32 %v1360, %v1390
      %v1394 = vmul.f32 %v1361, %v1390
      %v1395 = vmul.f32 %v1362, %v1390
      %v1396 = vmul.f32 %v1363, %v1390
      %v1397 = vmul.f32 %v1364, %v1390
      %v1398 = vmul.f32 %v1365, %v1390
      %v1399 = vmul.f32 %v1366, %v1390
      %v1400 = vmul.f32 %v1367, %v1390
      %v1401 = vmul.f32 %v1368, %v1390
      %v1402 = vmul.f32 %v1369, %v1390
      %v1403 = vmul.f32 %v1370, %v1390
      %v1404 = vmul.f32 %v1371, %v1390
      %v1405 = vmul.f32 %v1372, %v1390
      %v1406 = vmul.f32 %v1373, %v1390
      %v1407 = vmul.f32 %v1374, %v1390
      %v1408 = vmul.f32 %v1375, %v1390
      %v1409 = vmul.f32 %v1376, %v1390
      %v1410 = vmul.f32 %v1377, %v1390
      %v1411 = vmul.f32 %v1378, %v1390
      %v1412 = vmul.f32 %v1379, %v1390
      %v1413 = vmul.f32 %v1380, %v1390
      %v1414 = vmul.f32 %v1381, %v1390
      %v1415 = vmul.f32 %v1382, %v1390
      %v1416 = vmul.f32 %v1383, %v1390
      %v1417 = vmul.f32 %v1384, %v1390
      %v1418 = vmul.f32 %v1385, %v1390
      %v1419 = vmul.f32 %v1386, %v1390
      %v1420 = vmul.f32 %v1387, %v1390
      %v1421 = vmul.f32 %v1388, %v1390
      %v1422 = vmul.f32 %v1389, %v1390
      %v1423 = vadd.f32 %v1326, %v1391
      %v1424 = vadd.f32 %v1327, %v1392
      %v1425 = vadd.f32 %v1328, %v1393
      %v1426 = vadd.f32 %v1329, %v1394
      %v1427 = vadd.f32 %v1330, %v1395
      %v1428 = vadd.f32 %v1331, %v1396
      %v1429 = vadd.f32 %v1332, %v1397
      %v1430 = vadd.f32 %v1333, %v1398
      %v1431 = vadd.f32 %v1334, %v1399
      %v1432 = vadd.f32 %v1335, %v1400
      %v1433 = vadd.f32 %v1336, %v1401
      %v1434 = vadd.f32 %v1337, %v1402
      %v1435 = vadd.f32 %v1338, %v1403
      %v1436 = vadd.f32 %v1339, %v1404
      %v1437 = vadd.f32 %v1340, %v1405
      %v1438 = vadd.f32 %v1341, %v1406
      %v1439 = vadd.f32 %v1342, %v1407
      %v1440 = vadd.f32 %v1343, %v1408
      %v1441 = vadd.f32 %v1344, %v1409
      %v1442 = vadd.f32 %v1345, %v1410
      %v1443 = vadd.f32 %v1346, %v1411
      %v1444 = vadd.f32 %v1347, %v1412
      %v1445 = vadd.f32 %v1348, %v1413
      %v1446 = vadd.f32 %v1349, %v1414
      %v1447 = vadd.f32 %v1350, %v1415
      %v1448 = vadd.f32 %v1351, %v1416
      %v1449 = vadd.f32 %v1352, %v1417
      %v1450 = vadd.f32 %v1353, %v1418
      %v1451 = vadd.f32 %v1354, %v1419
      %v1452 = vadd.f32 %v1355, %v1420
      %v1453 = vadd.f32 %v1356, %v1421
      %v1454 = vadd.f32 %v1357, %v1422
      %s1455 = scalar_lea.vmem [#allocation2], 64
      %v1456 = vld [vmem:[%s1455 + $0x7] sm:$0xff]
      %v1457 = vld [vmem:[%s1455 + $0xf] sm:$0xff]
      %v1458 = vld [vmem:[%s1455 + $0x27] sm:$0xff]
      %v1459 = vld [vmem:[%s1455 + $0x2f] sm:$0xff]
      %v1460 = vld [vmem:[%s1455 + $0x47] sm:$0xff]
      %v1461 = vld [vmem:[%s1455 + $0x4f] sm:$0xff]
      %v1462 = vld [vmem:[%s1455 + $0x67] sm:$0xff]
      %v1463 = vld [vmem:[%s1455 + $0x6f] sm:$0xff]
      %v1464 = vld [vmem:[%s1455 + $0x87] sm:$0xff]
      %v1465 = vld [vmem:[%s1455 + $0x8f] sm:$0xff]
      %v1466 = vld [vmem:[%s1455 + $0xa7] sm:$0xff]
      %v1467 = vld [vmem:[%s1455 + $0xaf] sm:$0xff]
      %v1468 = vld [vmem:[%s1455 + $0xc7] sm:$0xff]
      %v1469 = vld [vmem:[%s1455 + $0xcf] sm:$0xff]
      %v1470 = vld [vmem:[%s1455 + $0xe7] sm:$0xff]
      %v1471 = vld [vmem:[%s1455 + $0xef] sm:$0xff]
      %v1472 = vld [vmem:[%s1455 + $0x107] sm:$0xff]
      %v1473 = vld [vmem:[%s1455 + $0x10f] sm:$0xff]
      %v1474 = vld [vmem:[%s1455 + $0x127] sm:$0xff]
      %v1475 = vld [vmem:[%s1455 + $0x12f] sm:$0xff]
      %v1476 = vld [vmem:[%s1455 + $0x147] sm:$0xff]
      %v1477 = vld [vmem:[%s1455 + $0x14f] sm:$0xff]
      %v1478 = vld [vmem:[%s1455 + $0x167] sm:$0xff]
      %v1479 = vld [vmem:[%s1455 + $0x16f] sm:$0xff]
      %v1480 = vld [vmem:[%s1455 + $0x187] sm:$0xff]
      %v1481 = vld [vmem:[%s1455 + $0x18f] sm:$0xff]
      %v1482 = vld [vmem:[%s1455 + $0x1a7] sm:$0xff]
      %v1483 = vld [vmem:[%s1455 + $0x1af] sm:$0xff]
      %v1484 = vld [vmem:[%s1455 + $0x1c7] sm:$0xff]
      %v1485 = vld [vmem:[%s1455 + $0x1cf] sm:$0xff]
      %v1486 = vld [vmem:[%s1455 + $0x1e7] sm:$0xff]
      %v1487 = vld [vmem:[%s1455 + $0x1ef] sm:$0xff]
      %v1488 = vperm.slane %v902, 0
      %v1489 = vmul.f32 %v1456, %v1488
      %v1490 = vmul.f32 %v1457, %v1488
      %v1491 = vmul.f32 %v1458, %v1488
      %v1492 = vmul.f32 %v1459, %v1488
      %v1493 = vmul.f32 %v1460, %v1488
      %v1494 = vmul.f32 %v1461, %v1488
      %v1495 = vmul.f32 %v1462, %v1488
      %v1496 = vmul.f32 %v1463, %v1488
      %v1497 = vmul.f32 %v1464, %v1488
      %v1498 = vmul.f32 %v1465, %v1488
      %v1499 = vmul.f32 %v1466, %v1488
      %v1500 = vmul.f32 %v1467, %v1488
      %v1501 = vmul.f32 %v1468, %v1488
      %v1502 = vmul.f32 %v1469, %v1488
      %v1503 = vmul.f32 %v1470, %v1488
      %v1504 = vmul.f32 %v1471, %v1488
      %v1505 = vmul.f32 %v1472, %v1488
      %v1506 = vmul.f32 %v1473, %v1488
      %v1507 = vmul.f32 %v1474, %v1488
      %v1508 = vmul.f32 %v1475, %v1488
      %v1509 = vmul.f32 %v1476, %v1488
      %v1510 = vmul.f32 %v1477, %v1488
      %v1511 = vmul.f32 %v1478, %v1488
      %v1512 = vmul.f32 %v1479, %v1488
      %v1513 = vmul.f32 %v1480, %v1488
      %v1514 = vmul.f32 %v1481, %v1488
      %v1515 = vmul.f32 %v1482, %v1488
      %v1516 = vmul.f32 %v1483, %v1488
      %v1517 = vmul.f32 %v1484, %v1488
      %v1518 = vmul.f32 %v1485, %v1488
      %v1519 = vmul.f32 %v1486, %v1488
      %v1520 = vmul.f32 %v1487, %v1488
      %v1521 = vadd.f32 %v1423, %v1489
      %v1522 = vadd.f32 %v1424, %v1490
      %v1523 = vadd.f32 %v1425, %v1491
      %v1524 = vadd.f32 %v1426, %v1492
      %v1525 = vadd.f32 %v1427, %v1493
      %v1526 = vadd.f32 %v1428, %v1494
      %v1527 = vadd.f32 %v1429, %v1495
      %v1528 = vadd.f32 %v1430, %v1496
      %v1529 = vadd.f32 %v1431, %v1497
      %v1530 = vadd.f32 %v1432, %v1498
      %v1531 = vadd.f32 %v1433, %v1499
      %v1532 = vadd.f32 %v1434, %v1500
      %v1533 = vadd.f32 %v1435, %v1501
      %v1534 = vadd.f32 %v1436, %v1502
      %v1535 = vadd.f32 %v1437, %v1503
      %v1536 = vadd.f32 %v1438, %v1504
      %v1537 = vadd.f32 %v1439, %v1505
      %v1538 = vadd.f32 %v1440, %v1506
      %v1539 = vadd.f32 %v1441, %v1507
      %v1540 = vadd.f32 %v1442, %v1508
      %v1541 = vadd.f32 %v1443, %v1509
      %v1542 = vadd.f32 %v1444, %v1510
      %v1543 = vadd.f32 %v1445, %v1511
      %v1544 = vadd.f32 %v1446, %v1512
      %v1545 = vadd.f32 %v1447, %v1513
      %v1546 = vadd.f32 %v1448, %v1514
      %v1547 = vadd.f32 %v1449, %v1515
      %v1548 = vadd.f32 %v1450, %v1516
      %v1549 = vadd.f32 %v1451, %v1517
      %v1550 = vadd.f32 %v1452, %v1518
      %v1551 = vadd.f32 %v1453, %v1519
      %v1552 = vadd.f32 %v1454, %v1520
      %v1553 = vld [vmem:[%s1455 + $0x8] sm:$0xff]
      %v1554 = vld [vmem:[%s1455 + $0x10] sm:$0xff]
      %v1555 = vld [vmem:[%s1455 + $0x28] sm:$0xff]
      %v1556 = vld [vmem:[%s1455 + $0x30] sm:$0xff]
      %v1557 = vld [vmem:[%s1455 + $0x48] sm:$0xff]
      %v1558 = vld [vmem:[%s1455 + $0x50] sm:$0xff]
      %v1559 = vld [vmem:[%s1455 + $0x68] sm:$0xff]
      %v1560 = vld [vmem:[%s1455 + $0x70] sm:$0xff]
      %v1561 = vld [vmem:[%s1455 + $0x88] sm:$0xff]
      %v1562 = vld [vmem:[%s1455 + $0x90] sm:$0xff]
      %v1563 = vld [vmem:[%s1455 + $0xa8] sm:$0xff]
      %v1564 = vld [vmem:[%s1455 + $0xb0] sm:$0xff]
      %v1565 = vld [vmem:[%s1455 + $0xc8] sm:$0xff]
      %v1566 = vld [vmem:[%s1455 + $0xd0] sm:$0xff]
      %v1567 = vld [vmem:[%s1455 + $0xe8] sm:$0xff]
      %v1568 = vld [vmem:[%s1455 + $0xf0] sm:$0xff]
      %v1569 = vld [vmem:[%s1455 + $0x108] sm:$0xff]
      %v1570 = vld [vmem:[%s1455 + $0x110] sm:$0xff]
      %v1571 = vld [vmem:[%s1455 + $0x128] sm:$0xff]
      %v1572 = vld [vmem:[%s1455 + $0x130] sm:$0xff]
      %v1573 = vld [vmem:[%s1455 + $0x148] sm:$0xff]
      %v1574 = vld [vmem:[%s1455 + $0x150] sm:$0xff]
      %v1575 = vld [vmem:[%s1455 + $0x168] sm:$0xff]
      %v1576 = vld [vmem:[%s1455 + $0x170] sm:$0xff]
      %v1577 = vld [vmem:[%s1455 + $0x188] sm:$0xff]
      %v1578 = vld [vmem:[%s1455 + $0x190] sm:$0xff]
      %v1579 = vld [vmem:[%s1455 + $0x1a8] sm:$0xff]
      %v1580 = vld [vmem:[%s1455 + $0x1b0] sm:$0xff]
      %v1581 = vld [vmem:[%s1455 + $0x1c8] sm:$0xff]
      %v1582 = vld [vmem:[%s1455 + $0x1d0] sm:$0xff]
      %v1583 = vld [vmem:[%s1455 + $0x1e8] sm:$0xff]
      %v1584 = vld [vmem:[%s1455 + $0x1f0] sm:$0xff]
      %v1585 = vperm.slane %v902, 1
      %v1586 = vmul.f32 %v1553, %v1585
      %v1587 = vmul.f32 %v1554, %v1585
      %v1588 = vmul.f32 %v1555, %v1585
      %v1589 = vmul.f32 %v1556, %v1585
      %v1590 = vmul.f32 %v1557, %v1585
      %v1591 = vmul.f32 %v1558, %v1585
      %v1592 = vmul.f32 %v1559, %v1585
      %v1593 = vmul.f32 %v1560, %v1585
      %v1594 = vmul.f32 %v1561, %v1585
      %v1595 = vmul.f32 %v1562, %v1585
      %v1596 = vmul.f32 %v1563, %v1585
      %v1597 = vmul.f32 %v1564, %v1585
      %v1598 = vmul.f32 %v1565, %v1585
      %v1599 = vmul.f32 %v1566, %v1585
      %v1600 = vmul.f32 %v1567, %v1585
      %v1601 = vmul.f32 %v1568, %v1585
      %v1602 = vmul.f32 %v1569, %v1585
      %v1603 = vmul.f32 %v1570, %v1585
      %v1604 = vmul.f32 %v1571, %v1585
      %v1605 = vmul.f32 %v1572, %v1585
      %v1606 = vmul.f32 %v1573, %v1585
      %v1607 = vmul.f32 %v1574, %v1585
      %v1608 = vmul.f32 %v1575, %v1585
      %v1609 = vmul.f32 %v1576, %v1585
      %v1610 = vmul.f32 %v1577, %v1585
      %v1611 = vmul.f32 %v1578, %v1585
      %v1612 = vmul.f32 %v1579, %v1585
      %v1613 = vmul.f32 %v1580, %v1585
      %v1614 = vmul.f32 %v1581, %v1585
      %v1615 = vmul.f32 %v1582, %v1585
      %v1616 = vmul.f32 %v1583, %v1585
      %v1617 = vmul.f32 %v1584, %v1585
      %v1618 = vadd.f32 %v1521, %v1586
      %v1619 = vadd.f32 %v1522, %v1587
      %v1620 = vadd.f32 %v1523, %v1588
      %v1621 = vadd.f32 %v1524, %v1589
      %v1622 = vadd.f32 %v1525, %v1590
      %v1623 = vadd.f32 %v1526, %v1591
      %v1624 = vadd.f32 %v1527, %v1592
      %v1625 = vadd.f32 %v1528, %v1593
      %v1626 = vadd.f32 %v1529, %v1594
      %v1627 = vadd.f32 %v1530, %v1595
      %v1628 = vadd.f32 %v1531, %v1596
      %v1629 = vadd.f32 %v1532, %v1597
      %v1630 = vadd.f32 %v1533, %v1598
      %v1631 = vadd.f32 %v1534, %v1599
      %v1632 = vadd.f32 %v1535, %v1600
      %v1633 = vadd.f32 %v1536, %v1601
      %v1634 = vadd.f32 %v1537, %v1602
      %v1635 = vadd.f32 %v1538, %v1603
      %v1636 = vadd.f32 %v1539, %v1604
      %v1637 = vadd.f32 %v1540, %v1605
      %v1638 = vadd.f32 %v1541, %v1606
      %v1639 = vadd.f32 %v1542, %v1607
      %v1640 = vadd.f32 %v1543, %v1608
      %v1641 = vadd.f32 %v1544, %v1609
      %v1642 = vadd.f32 %v1545, %v1610
      %v1643 = vadd.f32 %v1546, %v1611
      %v1644 = vadd.f32 %v1547, %v1612
      %v1645 = vadd.f32 %v1548, %v1613
      %v1646 = vadd.f32 %v1549, %v1614
      %v1647 = vadd.f32 %v1550, %v1615
      %v1648 = vadd.f32 %v1551, %v1616
      %v1649 = vadd.f32 %v1552, %v1617
      %v1650 = vld [vmem:[%s1455 + $0x9] sm:$0xff]
      %v1651 = vld [vmem:[%s1455 + $0x11] sm:$0xff]
      %v1652 = vld [vmem:[%s1455 + $0x29] sm:$0xff]
      %v1653 = vld [vmem:[%s1455 + $0x31] sm:$0xff]
      %v1654 = vld [vmem:[%s1455 + $0x49] sm:$0xff]
      %v1655 = vld [vmem:[%s1455 + $0x51] sm:$0xff]
      %v1656 = vld [vmem:[%s1455 + $0x69] sm:$0xff]
      %v1657 = vld [vmem:[%s1455 + $0x71] sm:$0xff]
      %v1658 = vld [vmem:[%s1455 + $0x89] sm:$0xff]
      %v1659 = vld [vmem:[%s1455 + $0x91] sm:$0xff]
      %v1660 = vld [vmem:[%s1455 + $0xa9] sm:$0xff]
      %v1661 = vld [vmem:[%s1455 + $0xb1] sm:$0xff]
      %v1662 = vld [vmem:[%s1455 + $0xc9] sm:$0xff]
      %v1663 = vld [vmem:[%s1455 + $0xd1] sm:$0xff]
      %v1664 = vld [vmem:[%s1455 + $0xe9] sm:$0xff]
      %v1665 = vld [vmem:[%s1455 + $0xf1] sm:$0xff]
      %v1666 = vld [vmem:[%s1455 + $0x109] sm:$0xff]
      %v1667 = vld [vmem:[%s1455 + $0x111] sm:$0xff]
      %v1668 = vld [vmem:[%s1455 + $0x129] sm:$0xff]
      %v1669 = vld [vmem:[%s1455 + $0x131] sm:$0xff]
      %v1670 = vld [vmem:[%s1455 + $0x149] sm:$0xff]
      %v1671 = vld [vmem:[%s1455 + $0x151] sm:$0xff]
      %v1672 = vld [vmem:[%s1455 + $0x169] sm:$0xff]
      %v1673 = vld [vmem:[%s1455 + $0x171] sm:$0xff]
      %v1674 = vld [vmem:[%s1455 + $0x189] sm:$0xff]
      %v1675 = vld [vmem:[%s1455 + $0x191] sm:$0xff]
      %v1676 = vld [vmem:[%s1455 + $0x1a9] sm:$0xff]
      %v1677 = vld [vmem:[%s1455 + $0x1b1] sm:$0xff]
      %v1678 = vld [vmem:[%s1455 + $0x1c9] sm:$0xff]
      %v1679 = vld [vmem:[%s1455 + $0x1d1] sm:$0xff]
      %v1680 = vld [vmem:[%s1455 + $0x1e9] sm:$0xff]
      %v1681 = vld [vmem:[%s1455 + $0x1f1] sm:$0xff]
      %v1682 = vperm.slane %v902, 2
      %v1683 = vmul.f32 %v1650, %v1682
      %v1684 = vmul.f32 %v1651, %v1682
      %v1685 = vmul.f32 %v1652, %v1682
      %v1686 = vmul.f32 %v1653, %v1682
      %v1687 = vmul.f32 %v1654, %v1682
      %v1688 = vmul.f32 %v1655, %v1682
      %v1689 = vmul.f32 %v1656, %v1682
      %v1690 = vmul.f32 %v1657, %v1682
      %v1691 = vmul.f32 %v1658, %v1682
      %v1692 = vmul.f32 %v1659, %v1682
      %v1693 = vmul.f32 %v1660, %v1682
      %v1694 = vmul.f32 %v1661, %v1682
      %v1695 = vmul.f32 %v1662, %v1682
      %v1696 = vmul.f32 %v1663, %v1682
      %v1697 = vmul.f32 %v1664, %v1682
      %v1698 = vmul.f32 %v1665, %v1682
      %v1699 = vmul.f32 %v1666, %v1682
      %v1700 = vmul.f32 %v1667, %v1682
      %v1701 = vmul.f32 %v1668, %v1682
      %v1702 = vmul.f32 %v1669, %v1682
      %v1703 = vmul.f32 %v1670, %v1682
      %v1704 = vmul.f32 %v1671, %v1682
      %v1705 = vmul.f32 %v1672, %v1682
      %v1706 = vmul.f32 %v1673, %v1682
      %v1707 = vmul.f32 %v1674, %v1682
      %v1708 = vmul.f32 %v1675, %v1682
      %v1709 = vmul.f32 %v1676, %v1682
      %v1710 = vmul.f32 %v1677, %v1682
      %v1711 = vmul.f32 %v1678, %v1682
      %v1712 = vmul.f32 %v1679, %v1682
      %v1713 = vmul.f32 %v1680, %v1682
      %v1714 = vmul.f32 %v1681, %v1682
      %v1715 = vadd.f32 %v1618, %v1683
      %v1716 = vadd.f32 %v1619, %v1684
      %v1717 = vadd.f32 %v1620, %v1685
      %v1718 = vadd.f32 %v1621, %v1686
      %v1719 = vadd.f32 %v1622, %v1687
      %v1720 = vadd.f32 %v1623, %v1688
      %v1721 = vadd.f32 %v1624, %v1689
      %v1722 = vadd.f32 %v1625, %v1690
      %v1723 = vadd.f32 %v1626, %v1691
      %v1724 = vadd.f32 %v1627, %v1692
      %v1725 = vadd.f32 %v1628, %v1693
      %v1726 = vadd.f32 %v1629, %v1694
      %v1727 = vadd.f32 %v1630, %v1695
      %v1728 = vadd.f32 %v1631, %v1696
      %v1729 = vadd.f32 %v1632, %v1697
      %v1730 = vadd.f32 %v1633, %v1698
      %v1731 = vadd.f32 %v1634, %v1699
      %v1732 = vadd.f32 %v1635, %v1700
      %v1733 = vadd.f32 %v1636, %v1701
      %v1734 = vadd.f32 %v1637, %v1702
      %v1735 = vadd.f32 %v1638, %v1703
      %v1736 = vadd.f32 %v1639, %v1704
      %v1737 = vadd.f32 %v1640, %v1705
      %v1738 = vadd.f32 %v1641, %v1706
      %v1739 = vadd.f32 %v1642, %v1707
      %v1740 = vadd.f32 %v1643, %v1708
      %v1741 = vadd.f32 %v1644, %v1709
      %v1742 = vadd.f32 %v1645, %v1710
      %v1743 = vadd.f32 %v1646, %v1711
      %v1744 = vadd.f32 %v1647, %v1712
      %v1745 = vadd.f32 %v1648, %v1713
      %v1746 = vadd.f32 %v1649, %v1714
      %v1748 = vperm.slane %v903, 0
      %v1750 = vmul.f32 %v1715, %v1748
      %v1751 = vmul.f32 %v1716, %v1748
      %v1752 = vmul.f32 %v1717, %v1748
      %v1753 = vmul.f32 %v1718, %v1748
      %v1754 = vmul.f32 %v1719, %v1748
      %v1755 = vmul.f32 %v1720, %v1748
      %v1756 = vmul.f32 %v1721, %v1748
      %v1757 = vmul.f32 %v1722, %v1748
      %v1758 = vmul.f32 %v1723, %v1748
      %v1759 = vmul.f32 %v1724, %v1748
      %v1760 = vmul.f32 %v1725, %v1748
      %v1761 = vmul.f32 %v1726, %v1748
      %v1762 = vmul.f32 %v1727, %v1748
      %v1763 = vmul.f32 %v1728, %v1748
      %v1764 = vmul.f32 %v1729, %v1748
      %v1765 = vmul.f32 %v1730, %v1748
      %v1766 = vmul.f32 %v1731, %v1748
      %v1767 = vmul.f32 %v1732, %v1748
      %v1768 = vmul.f32 %v1733, %v1748
      %v1769 = vmul.f32 %v1734, %v1748
      %v1770 = vmul.f32 %v1735, %v1748
      %v1771 = vmul.f32 %v1736, %v1748
      %v1772 = vmul.f32 %v1737, %v1748
      %v1773 = vmul.f32 %v1738, %v1748
      %v1774 = vmul.f32 %v1739, %v1748
      %v1775 = vmul.f32 %v1740, %v1748
      %v1776 = vmul.f32 %v1741, %v1748
      %v1777 = vmul.f32 %v1742, %v1748
      %v1778 = vmul.f32 %v1743, %v1748
      %v1779 = vmul.f32 %v1744, %v1748
      %v1780 = vmul.f32 %v1745, %v1748
      %v1781 = vmul.f32 %v1746, %v1748
      %v1783 = vperm.slane %v904, 0
      %v1785 = vadd.f32 %v1750, %v1783
      %v1786 = vadd.f32 %v1751, %v1783
      %v1787 = vadd.f32 %v1752, %v1783
      %v1788 = vadd.f32 %v1753, %v1783
      %v1789 = vadd.f32 %v1754, %v1783
      %v1790 = vadd.f32 %v1755, %v1783
      %v1791 = vadd.f32 %v1756, %v1783
      %v1792 = vadd.f32 %v1757, %v1783
      %v1793 = vadd.f32 %v1758, %v1783
      %v1794 = vadd.f32 %v1759, %v1783
      %v1795 = vadd.f32 %v1760, %v1783
      %v1796 = vadd.f32 %v1761, %v1783
      %v1797 = vadd.f32 %v1762, %v1783
      %v1798 = vadd.f32 %v1763, %v1783
      %v1799 = vadd.f32 %v1764, %v1783
      %v1800 = vadd.f32 %v1765, %v1783
      %v1801 = vadd.f32 %v1766, %v1783
      %v1802 = vadd.f32 %v1767, %v1783
      %v1803 = vadd.f32 %v1768, %v1783
      %v1804 = vadd.f32 %v1769, %v1783
      %v1805 = vadd.f32 %v1770, %v1783
      %v1806 = vadd.f32 %v1771, %v1783
      %v1807 = vadd.f32 %v1772, %v1783
      %v1808 = vadd.f32 %v1773, %v1783
      %v1809 = vadd.f32 %v1774, %v1783
      %v1810 = vadd.f32 %v1775, %v1783
      %v1811 = vadd.f32 %v1776, %v1783
      %v1812 = vadd.f32 %v1777, %v1783
      %v1813 = vadd.f32 %v1778, %v1783
      %v1814 = vadd.f32 %v1779, %v1783
      %v1815 = vadd.f32 %v1780, %v1783
      %v1816 = vadd.f32 %v1781, %v1783
      %v1817 = vmax.f32 %v1785, 0.0
      %v1818 = vmax.f32 %v1786, 0.0
      %v1819 = vmax.f32 %v1787, 0.0
      %v1820 = vmax.f32 %v1788, 0.0
      %v1821 = vmax.f32 %v1789, 0.0
      %v1822 = vmax.f32 %v1790, 0.0
      %v1823 = vmax.f32 %v1791, 0.0
      %v1824 = vmax.f32 %v1792, 0.0
      %v1825 = vmax.f32 %v1793, 0.0
      %v1826 = vmax.f32 %v1794, 0.0
      %v1827 = vmax.f32 %v1795, 0.0
      %v1828 = vmax.f32 %v1796, 0.0
      %v1829 = vmax.f32 %v1797, 0.0
      %v1830 = vmax.f32 %v1798, 0.0
      %v1831 = vmax.f32 %v1799, 0.0
      %v1832 = vmax.f32 %v1800, 0.0
      %v1833 = vmax.f32 %v1801, 0.0
      %v1834 = vmax.f32 %v1802, 0.0
      %v1835 = vmax.f32 %v1803, 0.0
      %v1836 = vmax.f32 %v1804, 0.0
      %v1837 = vmax.f32 %v1805, 0.0
      %v1838 = vmax.f32 %v1806, 0.0
      %v1839 = vmax.f32 %v1807, 0.0
      %v1840 = vmax.f32 %v1808, 0.0
      %v1841 = vmax.f32 %v1809, 0.0
      %v1842 = vmax.f32 %v1810, 0.0
      %v1843 = vmax.f32 %v1811, 0.0
      %v1844 = vmax.f32 %v1812, 0.0
      %v1845 = vmax.f32 %v1813, 0.0
      %v1846 = vmax.f32 %v1814, 0.0
      %v1847 = vmax.f32 %v1815, 0.0
      %v1848 = vmax.f32 %v1816, 0.0
      %v1849 = vmin.f32 %v1817, 6.0
      %v1850 = vmin.f32 %v1818, 6.0
      %v1851 = vmin.f32 %v1819, 6.0
      %v1852 = vmin.f32 %v1820, 6.0
      %v1853 = vmin.f32 %v1821, 6.0
      %v1854 = vmin.f32 %v1822, 6.0
      %v1855 = vmin.f32 %v1823, 6.0
      %v1856 = vmin.f32 %v1824, 6.0
      %v1857 = vmin.f32 %v1825, 6.0
      %v1858 = vmin.f32 %v1826, 6.0
      %v1859 = vmin.f32 %v1827, 6.0
      %v1860 = vmin.f32 %v1828, 6.0
      %v1861 = vmin.f32 %v1829, 6.0
      %v1862 = vmin.f32 %v1830, 6.0
      %v1863 = vmin.f32 %v1831, 6.0
      %v1864 = vmin.f32 %v1832, 6.0
      %v1865 = vmin.f32 %v1833, 6.0
      %v1866 = vmin.f32 %v1834, 6.0
      %v1867 = vmin.f32 %v1835, 6.0
      %v1868 = vmin.f32 %v1836, 6.0
      %v1869 = vmin.f32 %v1837, 6.0
      %v1870 = vmin.f32 %v1838, 6.0
      %v1871 = vmin.f32 %v1839, 6.0
      %v1872 = vmin.f32 %v1840, 6.0
      %v1873 = vmin.f32 %v1841, 6.0
      %v1874 = vmin.f32 %v1842, 6.0
      %v1875 = vmin.f32 %v1843, 6.0
      %v1876 = vmin.f32 %v1844, 6.0
      %v1877 = vmin.f32 %v1845, 6.0
      %v1878 = vmin.f32 %v1846, 6.0
      %v1879 = vmin.f32 %v1847, 6.0
      %v1880 = vmin.f32 %v1848, 6.0
      %v1881 = vpack.c.bf16 %v1850, %v1849
      %v1882 = vpack.c.bf16 %v1852, %v1851
      %v1883 = vpack.c.bf16 %v1854, %v1853
      %v1884 = vpack.c.bf16 %v1856, %v1855
      %v1885 = vpack.c.bf16 %v1858, %v1857
      %v1886 = vpack.c.bf16 %v1860, %v1859
      %v1887 = vpack.c.bf16 %v1862, %v1861
      %v1888 = vpack.c.bf16 %v1864, %v1863
      %v1889 = vpack.c.bf16 %v1866, %v1865
      %v1890 = vpack.c.bf16 %v1868, %v1867
      %v1891 = vpack.c.bf16 %v1870, %v1869
      %v1892 = vpack.c.bf16 %v1872, %v1871
      %v1893 = vpack.c.bf16 %v1874, %v1873
      %v1894 = vpack.c.bf16 %v1876, %v1875
      %v1895 = vpack.c.bf16 %v1878, %v1877
      %v1896 = vpack.c.bf16 %v1880, %v1879
      %v1897 = vld [vmem:[%s477] sm:$0xf]
      %v1898 = vld [vmem:[%s477 + $0x4] sm:$0xf]
      %v1899 = vld [vmem:[%s477 + $0x8] sm:$0xf]
      %v1900 = vld [vmem:[%s477 + $0xc] sm:$0xf]
      %v1901 = vld [vmem:[%s477 + $0x10] sm:$0xf]
      %v1902 = vld [vmem:[%s477 + $0x14] sm:$0xf]
      %v1903 = vld [vmem:[%s477 + $0x18] sm:$0xf]
      %v1904 = vld [vmem:[%s477 + $0x1c] sm:$0xf]
      %v1905 = vld [vmem:[%s477 + $0x20] sm:$0xf]
      %v1906 = vld [vmem:[%s477 + $0x24] sm:$0xf]
      %v1907 = vld [vmem:[%s477 + $0x28] sm:$0xf]
      %v1908 = vld [vmem:[%s477 + $0x2c] sm:$0xf]
      %v1909 = vld [vmem:[%s477 + $0x30] sm:$0xf]
      %v1910 = vld [vmem:[%s477 + $0x34] sm:$0xf]
      %v1911 = vld [vmem:[%s477 + $0x38] sm:$0xf]
      %v1912 = vld [vmem:[%s477 + $0x3c] sm:$0xf]
      %v1929 = vunpack.c.l.b16 %v1897
      %v1930 = vunpack.c.l.b16 %v1898
      %v1931 = vunpack.c.l.b16 %v1899
      %v1932 = vunpack.c.l.b16 %v1900
      %v1933 = vunpack.c.l.b16 %v1901
      %v1934 = vunpack.c.l.b16 %v1902
      %v1935 = vunpack.c.l.b16 %v1903
      %v1936 = vunpack.c.l.b16 %v1904
      %v1937 = vunpack.c.l.b16 %v1905
      %v1938 = vunpack.c.l.b16 %v1906
      %v1939 = vunpack.c.l.b16 %v1907
      %v1940 = vunpack.c.l.b16 %v1908
      %v1941 = vunpack.c.l.b16 %v1909
      %v1942 = vunpack.c.l.b16 %v1910
      %v1943 = vunpack.c.l.b16 %v1911
      %v1944 = vunpack.c.l.b16 %v1912
      %v1945 = vpack.c.b16 %v1930, %v1929
      %v1946 = vpack.c.b16 %v1932, %v1931
      %v1947 = vpack.c.b16 %v1934, %v1933
      %v1948 = vpack.c.b16 %v1936, %v1935
      %v1949 = vpack.c.b16 %v1938, %v1937
      %v1950 = vpack.c.b16 %v1940, %v1939
      %v1951 = vpack.c.b16 %v1942, %v1941
      %v1952 = vpack.c.b16 %v1944, %v1943
      %1961 = vmatpush.bf16.msra.mxu0 %v1952
      %1962 = vmatpush.bf16.msra.mxu0 %v1951
      %1963 = vmatpush.bf16.msra.mxu0 %v1950
      %1964 = vmatpush.bf16.msra.mxu0 %v1949
      %1965 = vmatpush.bf16.msra.mxu0 %v1948
      %1966 = vmatpush.bf16.msra.mxu0 %v1947
      %1967 = vmatpush.bf16.msra.mxu0 %v1946
      %1968 = vmatpush.bf16.msra.mxu0 %v1945
      %1969 = vmatmul.bf16.gmra.mxu0 %v1881
      %v1970 = vpop.f32.mrf.mxu0
      %v1971 = vadd.f32 0.0, %v1970
      %v1972 = vpop.f32.mrf.mxu0
      %v1973 = vadd.f32 0.0, %v1972
      %1974 = vmatmul.bf16.gmra.mxu0 %v1882
      %v1975 = vpop.f32.mrf.mxu0
      %v1976 = vadd.f32 0.0, %v1975
      %v1977 = vpop.f32.mrf.mxu0
      %v1978 = vadd.f32 0.0, %v1977
      %1979 = vmatmul.bf16.gmra.mxu0 %v1883
      %v1980 = vpop.f32.mrf.mxu0
      %v1981 = vadd.f32 0.0, %v1980
      %v1982 = vpop.f32.mrf.mxu0
      %v1983 = vadd.f32 0.0, %v1982
      %1984 = vmatmul.bf16.gmra.mxu0 %v1884
      %v1985 = vpop.f32.mrf.mxu0
      %v1986 = vadd.f32 0.0, %v1985
      %v1987 = vpop.f32.mrf.mxu0
      %v1988 = vadd.f32 0.0, %v1987
      %1989 = vmatmul.bf16.gmra.mxu0 %v1885
      %v1990 = vpop.f32.mrf.mxu0
      %v1991 = vadd.f32 0.0, %v1990
      %v1992 = vpop.f32.mrf.mxu0
      %v1993 = vadd.f32 0.0, %v1992
      %1994 = vmatmul.bf16.gmra.mxu0 %v1886
      %v1995 = vpop.f32.mrf.mxu0
      %v1996 = vadd.f32 0.0, %v1995
      %v1997 = vpop.f32.mrf.mxu0
      %v1998 = vadd.f32 0.0, %v1997
      %1999 = vmatmul.bf16.gmra.mxu0 %v1887
      %v2000 = vpop.f32.mrf.mxu0
      %v2001 = vadd.f32 0.0, %v2000
      %v2002 = vpop.f32.mrf.mxu0
      %v2003 = vadd.f32 0.0, %v2002
      %2004 = vmatmul.bf16.gmra.mxu0 %v1888
      %v2005 = vpop.f32.mrf.mxu0
      %v2006 = vadd.f32 0.0, %v2005
      %v2007 = vpop.f32.mrf.mxu0
      %v2008 = vadd.f32 0.0, %v2007
      %2009 = vmatmul.bf16.gmra.mxu0 %v1889
      %v2010 = vpop.f32.mrf.mxu0
      %v2011 = vadd.f32 0.0, %v2010
      %v2012 = vpop.f32.mrf.mxu0
      %v2013 = vadd.f32 0.0, %v2012
      %2014 = vmatmul.bf16.gmra.mxu0 %v1890
      %v2015 = vpop.f32.mrf.mxu0
      %v2016 = vadd.f32 0.0, %v2015
      %v2017 = vpop.f32.mrf.mxu0
      %v2018 = vadd.f32 0.0, %v2017
      %2019 = vmatmul.bf16.gmra.mxu0 %v1891
      %v2020 = vpop.f32.mrf.mxu0
      %v2021 = vadd.f32 0.0, %v2020
      %v2022 = vpop.f32.mrf.mxu0
      %v2023 = vadd.f32 0.0, %v2022
      %2024 = vmatmul.bf16.gmra.mxu0 %v1892
      %v2025 = vpop.f32.mrf.mxu0
      %v2026 = vadd.f32 0.0, %v2025
      %v2027 = vpop.f32.mrf.mxu0
      %v2028 = vadd.f32 0.0, %v2027
      %2029 = vmatmul.bf16.gmra.mxu0 %v1893
      %v2030 = vpop.f32.mrf.mxu0
      %v2031 = vadd.f32 0.0, %v2030
      %v2032 = vpop.f32.mrf.mxu0
      %v2033 = vadd.f32 0.0, %v2032
      %2034 = vmatmul.bf16.gmra.mxu0 %v1894
      %v2035 = vpop.f32.mrf.mxu0
      %v2036 = vadd.f32 0.0, %v2035
      %v2037 = vpop.f32.mrf.mxu0
      %v2038 = vadd.f32 0.0, %v2037
      %2039 = vmatmul.bf16.gmra.mxu0 %v1895
      %v2040 = vpop.f32.mrf.mxu0
      %v2041 = vadd.f32 0.0, %v2040
      %v2042 = vpop.f32.mrf.mxu0
      %v2043 = vadd.f32 0.0, %v2042
      %2044 = vmatmul.bf16.gmra.mxu0 %v1896
      %v2045 = vpop.f32.mrf.mxu0
      %v2046 = vadd.f32 0.0, %v2045
      %v2047 = vpop.f32.mrf.mxu0
      %v2048 = vadd.f32 0.0, %v2047
      %2049 = vdwg.mxu0
      %v2050 = vld [vmem:[%s8] sm:$0x1]
      %v2052 = vperm.slane %v2050, 0
      %v2054 = vmul.f32 %v1971, %v2052
      %v2055 = vmul.f32 %v1973, %v2052
      %v2056 = vmul.f32 %v1976, %v2052
      %v2057 = vmul.f32 %v1978, %v2052
      %v2058 = vmul.f32 %v1981, %v2052
      %v2059 = vmul.f32 %v1983, %v2052
      %v2060 = vmul.f32 %v1986, %v2052
      %v2061 = vmul.f32 %v1988, %v2052
      %v2062 = vmul.f32 %v1991, %v2052
      %v2063 = vmul.f32 %v1993, %v2052
      %v2064 = vmul.f32 %v1996, %v2052
      %v2065 = vmul.f32 %v1998, %v2052
      %v2066 = vmul.f32 %v2001, %v2052
      %v2067 = vmul.f32 %v2003, %v2052
      %v2068 = vmul.f32 %v2006, %v2052
      %v2069 = vmul.f32 %v2008, %v2052
      %v2070 = vmul.f32 %v2011, %v2052
      %v2071 = vmul.f32 %v2013, %v2052
      %v2072 = vmul.f32 %v2016, %v2052
      %v2073 = vmul.f32 %v2018, %v2052
      %v2074 = vmul.f32 %v2021, %v2052
      %v2075 = vmul.f32 %v2023, %v2052
      %v2076 = vmul.f32 %v2026, %v2052
      %v2077 = vmul.f32 %v2028, %v2052
      %v2078 = vmul.f32 %v2031, %v2052
      %v2079 = vmul.f32 %v2033, %v2052
      %v2080 = vmul.f32 %v2036, %v2052
      %v2081 = vmul.f32 %v2038, %v2052
      %v2082 = vmul.f32 %v2041, %v2052
      %v2083 = vmul.f32 %v2043, %v2052
      %v2084 = vmul.f32 %v2046, %v2052
      %v2085 = vmul.f32 %v2048, %v2052
      %v2086 = vld [vmem:[%s9] sm:$0x1]
      %v2088 = vperm.slane %v2086, 0
      %v2090 = vadd.f32 %v2054, %v2088
      %v2091 = vadd.f32 %v2055, %v2088
      %v2092 = vadd.f32 %v2056, %v2088
      %v2093 = vadd.f32 %v2057, %v2088
      %v2094 = vadd.f32 %v2058, %v2088
      %v2095 = vadd.f32 %v2059, %v2088
      %v2096 = vadd.f32 %v2060, %v2088
      %v2097 = vadd.f32 %v2061, %v2088
      %v2098 = vadd.f32 %v2062, %v2088
      %v2099 = vadd.f32 %v2063, %v2088
      %v2100 = vadd.f32 %v2064, %v2088
      %v2101 = vadd.f32 %v2065, %v2088
      %v2102 = vadd.f32 %v2066, %v2088
      %v2103 = vadd.f32 %v2067, %v2088
      %v2104 = vadd.f32 %v2068, %v2088
      %v2105 = vadd.f32 %v2069, %v2088
      %v2106 = vadd.f32 %v2070, %v2088
      %v2107 = vadd.f32 %v2071, %v2088
      %v2108 = vadd.f32 %v2072, %v2088
      %v2109 = vadd.f32 %v2073, %v2088
      %v2110 = vadd.f32 %v2074, %v2088
      %v2111 = vadd.f32 %v2075, %v2088
      %v2112 = vadd.f32 %v2076, %v2088
      %v2113 = vadd.f32 %v2077, %v2088
      %v2114 = vadd.f32 %v2078, %v2088
      %v2115 = vadd.f32 %v2079, %v2088
      %v2116 = vadd.f32 %v2080, %v2088
      %v2117 = vadd.f32 %v2081, %v2088
      %v2118 = vadd.f32 %v2082, %v2088
      %v2119 = vadd.f32 %v2083, %v2088
      %v2120 = vadd.f32 %v2084, %v2088
      %v2121 = vadd.f32 %v2085, %v2088
      %v2122 = vld [vmem:[%s452] sm:$0xff]
      %v2123 = vld [vmem:[%s452 + $0x8] sm:$0xff]
      %v2124 = vld [vmem:[%s452 + $0x10] sm:$0xff]
      %v2125 = vld [vmem:[%s452 + $0x18] sm:$0xff]
      %v2126 = vld [vmem:[%s452 + $0x20] sm:$0xff]
      %v2127 = vld [vmem:[%s452 + $0x28] sm:$0xff]
      %v2128 = vld [vmem:[%s452 + $0x30] sm:$0xff]
      %v2129 = vld [vmem:[%s452 + $0x38] sm:$0xff]
      %v2130 = vld [vmem:[%s452 + $0x40] sm:$0xff]
      %v2131 = vld [vmem:[%s452 + $0x48] sm:$0xff]
      %v2132 = vld [vmem:[%s452 + $0x50] sm:$0xff]
      %v2133 = vld [vmem:[%s452 + $0x58] sm:$0xff]
      %v2134 = vld [vmem:[%s452 + $0x60] sm:$0xff]
      %v2135 = vld [vmem:[%s452 + $0x68] sm:$0xff]
      %v2136 = vld [vmem:[%s452 + $0x70] sm:$0xff]
      %v2137 = vld [vmem:[%s452 + $0x78] sm:$0xff]
      %v2138 = vld [vmem:[%s452 + $0x80] sm:$0xff]
      %v2139 = vld [vmem:[%s452 + $0x88] sm:$0xff]
      %v2140 = vld [vmem:[%s452 + $0x90] sm:$0xff]
      %v2141 = vld [vmem:[%s452 + $0x98] sm:$0xff]
      %v2142 = vld [vmem:[%s452 + $0xa0] sm:$0xff]
      %v2143 = vld [vmem:[%s452 + $0xa8] sm:$0xff]
      %v2144 = vld [vmem:[%s452 + $0xb0] sm:$0xff]
      %v2145 = vld [vmem:[%s452 + $0xb8] sm:$0xff]
      %v2146 = vld [vmem:[%s452 + $0xc0] sm:$0xff]
      %v2147 = vld [vmem:[%s452 + $0xc8] sm:$0xff]
      %v2148 = vld [vmem:[%s452 + $0xd0] sm:$0xff]
      %v2149 = vld [vmem:[%s452 + $0xd8] sm:$0xff]
      %v2150 = vld [vmem:[%s452 + $0xe0] sm:$0xff]
      %v2151 = vld [vmem:[%s452 + $0xe8] sm:$0xff]
      %v2152 = vld [vmem:[%s452 + $0xf0] sm:$0xff]
      %v2153 = vld [vmem:[%s452 + $0xf8] sm:$0xff]
      %v2154 = vadd.f32 %v2090, %v2122
      %v2155 = vadd.f32 %v2091, %v2123
      %v2156 = vadd.f32 %v2092, %v2124
      %v2157 = vadd.f32 %v2093, %v2125
      %v2158 = vadd.f32 %v2094, %v2126
      %v2159 = vadd.f32 %v2095, %v2127
      %v2160 = vadd.f32 %v2096, %v2128
      %v2161 = vadd.f32 %v2097, %v2129
      %v2162 = vadd.f32 %v2098, %v2130
      %v2163 = vadd.f32 %v2099, %v2131
      %v2164 = vadd.f32 %v2100, %v2132
      %v2165 = vadd.f32 %v2101, %v2133
      %v2166 = vadd.f32 %v2102, %v2134
      %v2167 = vadd.f32 %v2103, %v2135
      %v2168 = vadd.f32 %v2104, %v2136
      %v2169 = vadd.f32 %v2105, %v2137
      %v2170 = vadd.f32 %v2106, %v2138
      %v2171 = vadd.f32 %v2107, %v2139
      %v2172 = vadd.f32 %v2108, %v2140
      %v2173 = vadd.f32 %v2109, %v2141
      %v2174 = vadd.f32 %v2110, %v2142
      %v2175 = vadd.f32 %v2111, %v2143
      %v2176 = vadd.f32 %v2112, %v2144
      %v2177 = vadd.f32 %v2113, %v2145
      %v2178 = vadd.f32 %v2114, %v2146
      %v2179 = vadd.f32 %v2115, %v2147
      %v2180 = vadd.f32 %v2116, %v2148
      %v2181 = vadd.f32 %v2117, %v2149
      %v2182 = vadd.f32 %v2118, %v2150
      %v2183 = vadd.f32 %v2119, %v2151
      %v2184 = vadd.f32 %v2120, %v2152
      %v2185 = vadd.f32 %v2121, %v2153
      %2186 = vst [vmem:[%s483] sm:$0xff] %v2154
      %2187 = vst [vmem:[%s483 + $0x8] sm:$0xff] %v2155
      %2188 = vst [vmem:[%s483 + $0x10] sm:$0xff] %v2156
      %2189 = vst [vmem:[%s483 + $0x18] sm:$0xff] %v2157
      %2190 = vst [vmem:[%s483 + $0x20] sm:$0xff] %v2158
      %2191 = vst [vmem:[%s483 + $0x28] sm:$0xff] %v2159
      %2192 = vst [vmem:[%s483 + $0x30] sm:$0xff] %v2160
      %2193 = vst [vmem:[%s483 + $0x38] sm:$0xff] %v2161
      %2194 = vst [vmem:[%s483 + $0x40] sm:$0xff] %v2162
      %2195 = vst [vmem:[%s483 + $0x48] sm:$0xff] %v2163
      %2196 = vst [vmem:[%s483 + $0x50] sm:$0xff] %v2164
      %2197 = vst [vmem:[%s483 + $0x58] sm:$0xff] %v2165
      %2198 = vst [vmem:[%s483 + $0x60] sm:$0xff] %v2166
      %2199 = vst [vmem:[%s483 + $0x68] sm:$0xff] %v2167
      %2200 = vst [vmem:[%s483 + $0x70] sm:$0xff] %v2168
      %2201 = vst [vmem:[%s483 + $0x78] sm:$0xff] %v2169
      %2202 = vst [vmem:[%s483 + $0x80] sm:$0xff] %v2170
      %2203 = vst [vmem:[%s483 + $0x88] sm:$0xff] %v2171
      %2204 = vst [vmem:[%s483 + $0x90] sm:$0xff] %v2172
      %2205 = vst [vmem:[%s483 + $0x98] sm:$0xff] %v2173
      %2206 = vst [vmem:[%s483 + $0xa0] sm:$0xff] %v2174
      %2207 = vst [vmem:[%s483 + $0xa8] sm:$0xff] %v2175
      %2208 = vst [vmem:[%s483 + $0xb0] sm:$0xff] %v2176
      %2209 = vst [vmem:[%s483 + $0xb8] sm:$0xff] %v2177
      %2210 = vst [vmem:[%s483 + $0xc0] sm:$0xff] %v2178
      %2211 = vst [vmem:[%s483 + $0xc8] sm:$0xff] %v2179
      %2212 = vst [vmem:[%s483 + $0xd0] sm:$0xff] %v2180
      %2213 = vst [vmem:[%s483 + $0xd8] sm:$0xff] %v2181
      %2214 = vst [vmem:[%s483 + $0xe0] sm:$0xff] %v2182
      %2215 = vst [vmem:[%s483 + $0xe8] sm:$0xff] %v2183
      %2216 = vst [vmem:[%s483 + $0xf0] sm:$0xff] %v2184
      %2217 = vst [vmem:[%s483 + $0xf8] sm:$0xff] %v2185
      %p2218 = scmp.lt.s32.totalorder %s25, 1
      %s2219 = scalar_select %p2218, %s25, 1
      %s2220 = smul.addr %s2219, 32
      %s2221 = smul.addr %s2220, 8
      %s2222 = scalar_lea.vmem %s10, %s2221
      // Predicated region
      $region65: #{mbconv_forward.1} parent=59 // pred_check
        %p2223 = pneg %p301
      $region66: #{mbconv_forward.1} parent=59 // pred_check_branch
        %2225 = sbr.rel (%p2223) target = $region68
      $region67: #{mbconv_forward.1} parent=59 // pred_region
        _
      $region68: #{mbconv_forward.1} parent=59 // pred_fallthru
        _
    $region60: #{mbconv_forward.1} parent=5 // pred_fallthru
      _
    %p2226 = scmp.le.s32.totalorder 2, %s16
    // Predicated region
    $region69: #{mbconv_forward.1} parent=5 // pred_check
      %p2227 = pneg %p2226
    $region70: #{mbconv_forward.1} parent=5 // pred_check_branch
      %2229 = sbr.rel (%p2227) target = $region72
    $region71: #{mbconv_forward.1} parent=5 // pred_region
      %s2230 = ssub.s32 %s16, 2
      // Predicated region
      $region73: #{mbconv_forward.1} parent=71 // pred_check
        %p2231 = pneg %p307
      $region74: #{mbconv_forward.1} parent=71 // pred_check_branch
        %2233 = sbr.rel (%p2231) target = $region76
      $region75: #{mbconv_forward.1} parent=71 // pred_region
        %p2234 = scmp.lt.s32.totalorder %s27, 1
        %s2235 = scalar_select %p2234, %s27, 1
        %s2236 = smul.addr %s2235, 32
        %s2237 = smul.addr %s2236, 8
        %s2238 = scalar_lea.vmem %s10, %s2237
      $region76: #{mbconv_forward.1} parent=71 // pred_fallthru
        _
    $region72: #{mbconv_forward.1} parent=5 // pred_fallthru
      _
  $region6: #{mbconv_forward.1} parent=0 // loop_footer
    %s20 = sadd.s32 1, %s16
  $region7: #{mbconv_forward.1} parent=0 // loop_footer_branch
    %15 = sbr.rel target = $region3
  $region8: #{mbconv_forward.1} parent=0 // loop_exit
    _

</llo_original>
